<compile_context>
chip_gen: v6e
topology: v6e:2x2x1
jax: 0.10.0
libtpu: 0.0.40
codegen_flags: <defaults>
</compile_context>

<pallas_src>
import functools

import jax
import jax.numpy as jnp
from jax import lax
from jax.experimental import pallas as pl
from jax.experimental.pallas import tpu as pltpu

NEG_INF = -1e10


def _act_kernel(x_ref, wp_ref, bp_ref, gumbel_ref, umask_ref, randa_ref,
                avail_ref, actions_ref, logp_ref, *,
                num_splits, n_sbs, num_heads, act_dim,
                noise_epsilon, deterministic):
    x = x_ref[...]                                        # [B, D]
    gumb = gumbel_ref[...]                                # [B, H*A]
    umask = umask_ref[...]                                # [B, H]
    randa = randa_ref[...]                                # [B, H]
    avail = avail_ref[...]                                # [B, H]

    B = x.shape[0]
    A = act_dim
    ue_count = num_heads // n_sbs

    # --- one fused MXU matmul for all heads (lane-packed weights) ---
    logits_all = jnp.dot(x, wp_ref[...],
                         preferred_element_type=jnp.float32) + bp_ref[...]

    # hoisted iotas (int32 iota -> f32 cast for robust lowering)
    act_ids = lax.broadcasted_iota(jnp.int32, (B, A), 1).astype(jnp.float32)
    head_ids = lax.broadcasted_iota(jnp.int32, (B, num_heads), 1).astype(jnp.float32)

    taken = [jnp.zeros((B, 1), jnp.float32) for _ in range(ue_count)]
    actions_acc = jnp.zeros((B, num_heads), jnp.float32)
    logp_sum = jnp.zeros((B, 1), jnp.float32)

    # Static unroll over heads.  Heads of distinct UEs carry no data
    # dependency, so the scheduler overlaps them; the true serial chain
    # depth is n_sbs (through taken[ue]).
    for h in range(num_heads):
        ue = h // n_sbs

        logits = logits_all[:, h * A:(h + 1) * A]                    # [B, A]

        # --- split-budget action mask (serial dependency via taken[ue]) ---
        rem = jnp.float32(num_splits) - taken[ue]                    # [B, 1]
        mask = act_ids <= rem                                        # [B, A]
        mlogits = jnp.where(mask, logits, jnp.float32(NEG_INF))

        # --- log-softmax ---
        m = jnp.max(mlogits, axis=-1, keepdims=True)
        z = mlogits - m
        lse = jnp.log(jnp.sum(jnp.exp(z), axis=-1, keepdims=True))
        log_probs = z - lse                                          # [B, A]

        # --- sample (Gumbel-max) or mode (argmax, first maximal index) ---
        if deterministic:
            scores = mlogits
        else:
            scores = mlogits + gumb[:, h * A:(h + 1) * A]
        smax = jnp.max(scores, axis=-1, keepdims=True)
        action = jnp.min(jnp.where(scores >= smax, act_ids, jnp.float32(A)),
                         axis=-1, keepdims=True)                     # [B, 1]

        # --- log_prob of the pre-noise sampled action (one-hot gather) ---
        onehot = (act_ids == action).astype(jnp.float32)
        logp = jnp.sum(onehot * log_probs, axis=-1, keepdims=True)   # [B, 1]

        # --- MADDPG epsilon-greedy noise ---
        rmask = (umask[:, h:h + 1] < jnp.float32(noise_epsilon)).astype(jnp.float32)
        action = rmask * randa[:, h:h + 1] + (1.0 - rmask) * action

        # --- available_actions masking (offloading: multiplicative) ---
        av = avail[:, h:h + 1]
        action = action * av
        logp = logp * av

        # accumulate outputs (single lane-dense store at the end)
        actions_acc = actions_acc + action * (
            head_ids == jnp.float32(h)).astype(jnp.float32)
        logp_sum = logp_sum + logp
        taken[ue] = taken[ue] + action        # post-noise, post-avail (as torch)

    actions_ref[...] = actions_acc
    logp_ref[...] = logp_sum


def _pick_batch_tile(B):
    """Largest multiple-of-8 divisor of B that is <= 128, else the full batch."""
    if B % 8 == 0:
        tb = min(B, 128)
        while B % tb:
            tb -= 8
        return tb
    return B


def multi_discrete_act_forward(key, x, W, b, avail, *,
                               num_splits, n_sbs,
                               noise_epsilon=0.1, deterministic=False):
    """Returns (actions [B,H], action_log_probs [B,1], available_actions)."""
    B, D = x.shape
    H, _, A = W.shape

    # Lane-dense packing of per-head params: Wp[:, h*A:(h+1)*A] == W[h].
    Wp = jnp.transpose(W, (1, 0, 2)).reshape(D, H * A)   # [D, H*A]
    bp = b.reshape(1, H * A)                             # [1, H*A]

    # Draw all randomness once, host-side (distribution-equivalent to torch RNG).
    kg, km, kr = jax.random.split(key, 3)
    gumbel = jax.random.gumbel(kg, (B, H * A), dtype=jnp.float32)
    u_mask = jax.random.uniform(km, (B, H), dtype=jnp.float32)
    rand_act = jax.random.randint(kr, (B, H), 0, A).astype(jnp.float32)

    TB = _pick_batch_tile(B)
    grid = (B // TB,)

    kernel = functools.partial(
        _act_kernel,
        num_splits=num_splits, n_sbs=n_sbs, num_heads=H, act_dim=A,
        noise_epsilon=noise_epsilon, deterministic=deterministic)

    actions, logp = pl.pallas_call(
        kernel,
        out_shape=(jax.ShapeDtypeStruct((B, H), jnp.float32),
                   jax.ShapeDtypeStruct((B, 1), jnp.float32)),
        grid=grid,
        in_specs=[
            pl.BlockSpec((TB, D), lambda i: (i, 0)),        # x
            pl.BlockSpec((D, H * A), lambda i: (0, 0)),     # Wp (resident)
            pl.BlockSpec((1, H * A), lambda i: (0, 0)),     # bp (resident)
            pl.BlockSpec((TB, H * A), lambda i: (i, 0)),    # gumbel
            pl.BlockSpec((TB, H), lambda i: (i, 0)),        # eps-mask uniforms
            pl.BlockSpec((TB, H), lambda i: (i, 0)),        # random actions
            pl.BlockSpec((TB, H), lambda i: (i, 0)),        # available_actions
        ],
        out_specs=(
            pl.BlockSpec((TB, H), lambda i: (i, 0)),        # actions
            pl.BlockSpec((TB, 1), lambda i: (i, 0)),        # action_log_probs
        ),
        compiler_params=pltpu.CompilerParams(
            dimension_semantics=("parallel",)),
    )(x, Wp, bp, gumbel, u_mask, rand_act, avail)

    return actions, logp, avail


if __name__ == "__main__":
    # Module configuration (small, consistent with the 'offloading' metadata path)
    B = 8                 # batch (sublane-aligned)
    D = 32                # inputs_dim
    num_agents = 2
    n_sbs = 2
    max_users = 4
    num_splits = 4        # metadata['split_quantization']
    ue_count = n_sbs * max_users // num_agents      # = 4
    H = ue_count * n_sbs                            # number of Categorical heads = 8
    A = num_splits + 1                              # action dim per head = 5
    gain = 0.01
    noise_epsilon = 0.1

    key = jax.random.PRNGKey(0)
    keys = jax.random.split(key, H + 3)

    # Deterministic parameter init (orthogonal * gain weights, zero bias),
    # mirroring Categorical(inputs_dim, action_dim, use_orthogonal, gain).
    ortho = jax.nn.initializers.orthogonal(scale=gain)
    W = jnp.stack([ortho(keys[h], (D, A), jnp.float32) for h in range(H)])  # [H, D, A]
    b = jnp.zeros((H, 1, A), jnp.float32)

    x = jax.random.normal(keys[H], (B, D), dtype=jnp.float32)
    avail = (jax.random.uniform(keys[H + 1], (B, H)) > 0.2).astype(jnp.float32)
    rng_key = keys[H + 2]

    actions, action_log_probs, avail_out = multi_discrete_act_forward(
        rng_key, x, W, b, avail,
        num_splits=num_splits, n_sbs=n_sbs,
        noise_epsilon=noise_epsilon, deterministic=False)

    jax.block_until_ready((actions, action_log_probs, avail_out))

    assert actions.shape == (B, H)
    assert action_log_probs.shape == (B, 1)
    # sanity: actions are integer-valued in [0, A-1]
    assert bool(jnp.all(actions >= 0)) and bool(jnp.all(actions <= A - 1))
    assert bool(jnp.all(actions == jnp.round(actions)))
    # sanity: summed log-probs are finite and non-positive
    assert bool(jnp.all(jnp.isfinite(action_log_probs)))
    assert bool(jnp.all(action_log_probs <= 1e-5))
    print("KERNEL_OK")
</pallas_src>

<mosaic_0001>
module attributes {stable_mosaic.version = 11 : i64} {
  func.func @_act_kernel(%arg0: i32, %arg1: memref<8x32xf32, #tpu.memory_space<vmem>>, %arg2: memref<32x40xf32, #tpu.memory_space<vmem>>, %arg3: memref<1x40xf32, #tpu.memory_space<vmem>>, %arg4: memref<8x40xf32, #tpu.memory_space<vmem>>, %arg5: memref<8x8xf32, #tpu.memory_space<vmem>>, %arg6: memref<8x8xf32, #tpu.memory_space<vmem>>, %arg7: memref<8x8xf32, #tpu.memory_space<vmem>>, %arg8: memref<8x8xf32, #tpu.memory_space<vmem>>, %arg9: memref<8x1xf32, #tpu.memory_space<vmem>>) attributes {dimension_semantics = [#tpu.dimension_semantics<parallel>], iteration_bounds = array<i64: 1>, scalar_prefetch = 0 : i64, scratch_operands = 0 : i64, tpu.core_type = #tpu.core_type<tc>, window_params = [{transform_indices = @transform_0, window_bounds = array<i64: 8, 32>}, {pipeline_mode = #tpu.pipeline_mode<synchronous>, transform_indices = @transform_1, window_bounds = array<i64: 32, 40>}, {pipeline_mode = #tpu.pipeline_mode<synchronous>, transform_indices = @transform_2, window_bounds = array<i64: 1, 40>}, {transform_indices = @transform_3, window_bounds = array<i64: 8, 40>}, {transform_indices = @transform_4, window_bounds = array<i64: 8, 8>}, {transform_indices = @transform_5, window_bounds = array<i64: 8, 8>}, {transform_indices = @transform_6, window_bounds = array<i64: 8, 8>}, {transform_indices = @transform_7, window_bounds = array<i64: 8, 8>}, {transform_indices = @transform_8, window_bounds = array<i64: 8, 1>}]} {
    %c0 = arith.constant 0 : index
    %c0_0 = arith.constant 0 : index
    %0 = vector.load %arg1[%c0, %c0_0] : memref<8x32xf32, #tpu.memory_space<vmem>>, vector<8x32xf32>
    %c0_1 = arith.constant 0 : index
    %c0_2 = arith.constant 0 : index
    %1 = vector.load %arg4[%c0_1, %c0_2] : memref<8x40xf32, #tpu.memory_space<vmem>>, vector<8x40xf32>
    %c0_3 = arith.constant 0 : index
    %c0_4 = arith.constant 0 : index
    %2 = vector.load %arg5[%c0_3, %c0_4] : memref<8x8xf32, #tpu.memory_space<vmem>>, vector<8x8xf32>
    %c0_5 = arith.constant 0 : index
    %c0_6 = arith.constant 0 : index
    %3 = vector.load %arg6[%c0_5, %c0_6] : memref<8x8xf32, #tpu.memory_space<vmem>>, vector<8x8xf32>
    %c0_7 = arith.constant 0 : index
    %c0_8 = arith.constant 0 : index
    %4 = vector.load %arg7[%c0_7, %c0_8] : memref<8x8xf32, #tpu.memory_space<vmem>>, vector<8x8xf32>
    %c0_9 = arith.constant 0 : index
    %c0_10 = arith.constant 0 : index
    %5 = vector.load %arg2[%c0_9, %c0_10] : memref<32x40xf32, #tpu.memory_space<vmem>>, vector<32x40xf32>
    %cst = arith.constant dense<0.000000e+00> : vector<8x40xf32>
    %6 = tpu.matmul %0, %5, %cst {dimension_numbers = #tpu.dot_dimension_numbers<[1], [0], [0], [1], [0, 0, 1, 1], [], []>} : vector<8x32xf32>, vector<32x40xf32>, vector<8x40xf32> -> vector<8x40xf32>
    %c0_11 = arith.constant 0 : index
    %c0_12 = arith.constant 0 : index
    %7 = vector.load %arg3[%c0_11, %c0_12] : memref<1x40xf32, #tpu.memory_space<vmem>>, vector<1x40xf32>
    %8 = vector.broadcast %7 : vector<1x40xf32> to vector<8x40xf32>
    %9 = arith.addf %6, %8 : vector<8x40xf32>
    %10 = tpu.iota {dimensions = array<i32: 1>} : vector<8x5xi32>
    %11 = arith.sitofp %10 : vector<8x5xi32> to vector<8x5xf32>
    %12 = tpu.iota {dimensions = array<i32: 1>} : vector<8x8xi32>
    %13 = arith.sitofp %12 : vector<8x8xi32> to vector<8x8xf32>
    %cst_13 = arith.constant 0.000000e+00 : f32
    %14 = vector.broadcast %cst_13 : f32 to vector<8x1xf32>
    %cst_14 = arith.constant 0.000000e+00 : f32
    %15 = vector.broadcast %cst_14 : f32 to vector<8x1xf32>
    %cst_15 = arith.constant 0.000000e+00 : f32
    %16 = vector.broadcast %cst_15 : f32 to vector<8x1xf32>
    %cst_16 = arith.constant 0.000000e+00 : f32
    %17 = vector.broadcast %cst_16 : f32 to vector<8x1xf32>
    %cst_17 = arith.constant 0.000000e+00 : f32
    %18 = vector.broadcast %cst_17 : f32 to vector<8x8xf32>
    %cst_18 = arith.constant 0.000000e+00 : f32
    %19 = vector.broadcast %cst_18 : f32 to vector<8x1xf32>
    %20 = vector.extract_strided_slice %9 {offsets = [0, 0], sizes = [8, 5], strides = [1, 1]} : vector<8x40xf32> to vector<8x5xf32>
    %cst_19 = arith.constant 4.000000e+00 : f32
    %21 = vector.broadcast %cst_19 : f32 to vector<8x1xf32>
    %22 = arith.subf %21, %14 : vector<8x1xf32>
    %23 = vector.broadcast %22 : vector<8x1xf32> to vector<8x5xf32>
    %24 = arith.cmpf ole, %11, %23 : vector<8x5xf32>
    %cst_20 = arith.constant -1.000000e+10 : f32
    %25 = vector.broadcast %cst_20 : f32 to vector<8x5xf32>
    %26 = arith.select %24, %20, %25 : vector<8x5xi1>, vector<8x5xf32>
    %cst_21 = arith.constant dense<0xFF800000> : vector<8xf32>
    %27 = vector.multi_reduction <maximumf>, %26, %cst_21 [1] : vector<8x5xf32> to vector<8xf32>
    %28 = vector.shape_cast %27 : vector<8xf32> to vector<8x1xf32>
    %29 = vector.broadcast %28 : vector<8x1xf32> to vector<8x5xf32>
    %30 = arith.subf %26, %29 : vector<8x5xf32>
    %31 = math.exp %30 : vector<8x5xf32>
    %cst_22 = arith.constant dense<0.000000e+00> : vector<8xf32>
    %32 = vector.multi_reduction <add>, %31, %cst_22 [1] : vector<8x5xf32> to vector<8xf32>
    %33 = vector.shape_cast %32 : vector<8xf32> to vector<8x1xf32>
    %34 = math.log %33 : vector<8x1xf32>
    %35 = vector.broadcast %34 : vector<8x1xf32> to vector<8x5xf32>
    %36 = arith.subf %30, %35 : vector<8x5xf32>
    %37 = vector.extract_strided_slice %1 {offsets = [0, 0], sizes = [8, 5], strides = [1, 1]} : vector<8x40xf32> to vector<8x5xf32>
    %38 = arith.addf %26, %37 : vector<8x5xf32>
    %cst_23 = arith.constant dense<0xFF800000> : vector<8xf32>
    %39 = vector.multi_reduction <maximumf>, %38, %cst_23 [1] : vector<8x5xf32> to vector<8xf32>
    %40 = vector.shape_cast %39 : vector<8xf32> to vector<8x1xf32>
    %41 = vector.broadcast %40 : vector<8x1xf32> to vector<8x5xf32>
    %42 = arith.cmpf oge, %38, %41 : vector<8x5xf32>
    %cst_24 = arith.constant 5.000000e+00 : f32
    %43 = vector.broadcast %cst_24 : f32 to vector<8x5xf32>
    %44 = arith.select %42, %11, %43 : vector<8x5xi1>, vector<8x5xf32>
    %cst_25 = arith.constant dense<0x7F800000> : vector<8xf32>
    %45 = vector.multi_reduction <minimumf>, %44, %cst_25 [1] : vector<8x5xf32> to vector<8xf32>
    %46 = vector.shape_cast %45 : vector<8xf32> to vector<8x1xf32>
    %47 = vector.broadcast %46 : vector<8x1xf32> to vector<8x5xf32>
    %48 = arith.cmpf oeq, %11, %47 : vector<8x5xf32>
    %49 = arith.extui %48 : vector<8x5xi1> to vector<8x5xi32>
    %50 = arith.sitofp %49 : vector<8x5xi32> to vector<8x5xf32>
    %51 = arith.mulf %50, %36 : vector<8x5xf32>
    %cst_26 = arith.constant dense<0.000000e+00> : vector<8xf32>
    %52 = vector.multi_reduction <add>, %51, %cst_26 [1] : vector<8x5xf32> to vector<8xf32>
    %53 = vector.shape_cast %52 : vector<8xf32> to vector<8x1xf32>
    %54 = vector.extract_strided_slice %2 {offsets = [0, 0], sizes = [8, 1], strides = [1, 1]} : vector<8x8xf32> to vector<8x1xf32>
    %cst_27 = arith.constant 1.000000e-01 : f32
    %55 = vector.broadcast %cst_27 : f32 to vector<8x1xf32>
    %56 = arith.cmpf olt, %54, %55 : vector<8x1xf32>
    %57 = arith.extui %56 : vector<8x1xi1> to vector<8x1xi32>
    %58 = arith.sitofp %57 : vector<8x1xi32> to vector<8x1xf32>
    %59 = vector.extract_strided_slice %3 {offsets = [0, 0], sizes = [8, 1], strides = [1, 1]} : vector<8x8xf32> to vector<8x1xf32>
    %60 = arith.mulf %58, %59 : vector<8x1xf32>
    %cst_28 = arith.constant 1.000000e+00 : f32
    %61 = vector.broadcast %cst_28 : f32 to vector<8x1xf32>
    %62 = arith.subf %61, %58 : vector<8x1xf32>
    %63 = arith.mulf %62, %46 : vector<8x1xf32>
    %64 = arith.addf %60, %63 : vector<8x1xf32>
    %65 = vector.extract_strided_slice %4 {offsets = [0, 0], sizes = [8, 1], strides = [1, 1]} : vector<8x8xf32> to vector<8x1xf32>
    %66 = arith.mulf %64, %65 : vector<8x1xf32>
    %67 = arith.mulf %53, %65 : vector<8x1xf32>
    %cst_29 = arith.constant 0.000000e+00 : f32
    %68 = vector.broadcast %cst_29 : f32 to vector<8x8xf32>
    %69 = arith.cmpf oeq, %13, %68 : vector<8x8xf32>
    %70 = arith.extui %69 : vector<8x8xi1> to vector<8x8xi32>
    %71 = arith.sitofp %70 : vector<8x8xi32> to vector<8x8xf32>
    %72 = vector.broadcast %66 : vector<8x1xf32> to vector<8x8xf32>
    %73 = arith.mulf %72, %71 : vector<8x8xf32>
    %74 = arith.addf %18, %73 : vector<8x8xf32>
    %75 = arith.addf %19, %67 : vector<8x1xf32>
    %76 = arith.addf %14, %66 : vector<8x1xf32>
    %77 = vector.extract_strided_slice %9 {offsets = [0, 5], sizes = [8, 5], strides = [1, 1]} : vector<8x40xf32> to vector<8x5xf32>
    %cst_30 = arith.constant 4.000000e+00 : f32
    %78 = vector.broadcast %cst_30 : f32 to vector<8x1xf32>
    %79 = arith.subf %78, %76 : vector<8x1xf32>
    %80 = vector.broadcast %79 : vector<8x1xf32> to vector<8x5xf32>
    %81 = arith.cmpf ole, %11, %80 : vector<8x5xf32>
    %cst_31 = arith.constant -1.000000e+10 : f32
    %82 = vector.broadcast %cst_31 : f32 to vector<8x5xf32>
    %83 = arith.select %81, %77, %82 : vector<8x5xi1>, vector<8x5xf32>
    %cst_32 = arith.constant dense<0xFF800000> : vector<8xf32>
    %84 = vector.multi_reduction <maximumf>, %83, %cst_32 [1] : vector<8x5xf32> to vector<8xf32>
    %85 = vector.shape_cast %84 : vector<8xf32> to vector<8x1xf32>
    %86 = vector.broadcast %85 : vector<8x1xf32> to vector<8x5xf32>
    %87 = arith.subf %83, %86 : vector<8x5xf32>
    %88 = math.exp %87 : vector<8x5xf32>
    %cst_33 = arith.constant dense<0.000000e+00> : vector<8xf32>
    %89 = vector.multi_reduction <add>, %88, %cst_33 [1] : vector<8x5xf32> to vector<8xf32>
    %90 = vector.shape_cast %89 : vector<8xf32> to vector<8x1xf32>
    %91 = math.log %90 : vector<8x1xf32>
    %92 = vector.broadcast %91 : vector<8x1xf32> to vector<8x5xf32>
    %93 = arith.subf %87, %92 : vector<8x5xf32>
    %94 = vector.extract_strided_slice %1 {offsets = [0, 5], sizes = [8, 5], strides = [1, 1]} : vector<8x40xf32> to vector<8x5xf32>
    %95 = arith.addf %83, %94 : vector<8x5xf32>
    %cst_34 = arith.constant dense<0xFF800000> : vector<8xf32>
    %96 = vector.multi_reduction <maximumf>, %95, %cst_34 [1] : vector<8x5xf32> to vector<8xf32>
    %97 = vector.shape_cast %96 : vector<8xf32> to vector<8x1xf32>
    %98 = vector.broadcast %97 : vector<8x1xf32> to vector<8x5xf32>
    %99 = arith.cmpf oge, %95, %98 : vector<8x5xf32>
    %cst_35 = arith.constant 5.000000e+00 : f32
    %100 = vector.broadcast %cst_35 : f32 to vector<8x5xf32>
    %101 = arith.select %99, %11, %100 : vector<8x5xi1>, vector<8x5xf32>
    %cst_36 = arith.constant dense<0x7F800000> : vector<8xf32>
    %102 = vector.multi_reduction <minimumf>, %101, %cst_36 [1] : vector<8x5xf32> to vector<8xf32>
    %103 = vector.shape_cast %102 : vector<8xf32> to vector<8x1xf32>
    %104 = vector.broadcast %103 : vector<8x1xf32> to vector<8x5xf32>
    %105 = arith.cmpf oeq, %11, %104 : vector<8x5xf32>
    %106 = arith.extui %105 : vector<8x5xi1> to vector<8x5xi32>
    %107 = arith.sitofp %106 : vector<8x5xi32> to vector<8x5xf32>
    %108 = arith.mulf %107, %93 : vector<8x5xf32>
    %cst_37 = arith.constant dense<0.000000e+00> : vector<8xf32>
    %109 = vector.multi_reduction <add>, %108, %cst_37 [1] : vector<8x5xf32> to vector<8xf32>
    %110 = vector.shape_cast %109 : vector<8xf32> to vector<8x1xf32>
    %111 = vector.extract_strided_slice %2 {offsets = [0, 1], sizes = [8, 1], strides = [1, 1]} : vector<8x8xf32> to vector<8x1xf32>
    %cst_38 = arith.constant 1.000000e-01 : f32
    %112 = vector.broadcast %cst_38 : f32 to vector<8x1xf32>
    %113 = arith.cmpf olt, %111, %112 : vector<8x1xf32>
    %114 = arith.extui %113 : vector<8x1xi1> to vector<8x1xi32>
    %115 = arith.sitofp %114 : vector<8x1xi32> to vector<8x1xf32>
    %116 = vector.extract_strided_slice %3 {offsets = [0, 1], sizes = [8, 1], strides = [1, 1]} : vector<8x8xf32> to vector<8x1xf32>
    %117 = arith.mulf %115, %116 : vector<8x1xf32>
    %cst_39 = arith.constant 1.000000e+00 : f32
    %118 = vector.broadcast %cst_39 : f32 to vector<8x1xf32>
    %119 = arith.subf %118, %115 : vector<8x1xf32>
    %120 = arith.mulf %119, %103 : vector<8x1xf32>
    %121 = arith.addf %117, %120 : vector<8x1xf32>
    %122 = vector.extract_strided_slice %4 {offsets = [0, 1], sizes = [8, 1], strides = [1, 1]} : vector<8x8xf32> to vector<8x1xf32>
    %123 = arith.mulf %121, %122 : vector<8x1xf32>
    %124 = arith.mulf %110, %122 : vector<8x1xf32>
    %cst_40 = arith.constant 1.000000e+00 : f32
    %125 = vector.broadcast %cst_40 : f32 to vector<8x8xf32>
    %126 = arith.cmpf oeq, %13, %125 : vector<8x8xf32>
    %127 = arith.extui %126 : vector<8x8xi1> to vector<8x8xi32>
    %128 = arith.sitofp %127 : vector<8x8xi32> to vector<8x8xf32>
    %129 = vector.broadcast %123 : vector<8x1xf32> to vector<8x8xf32>
    %130 = arith.mulf %129, %128 : vector<8x8xf32>
    %131 = arith.addf %74, %130 : vector<8x8xf32>
    %132 = arith.addf %75, %124 : vector<8x1xf32>
    %133 = vector.extract_strided_slice %9 {offsets = [0, 10], sizes = [8, 5], strides = [1, 1]} : vector<8x40xf32> to vector<8x5xf32>
    %cst_41 = arith.constant 4.000000e+00 : f32
    %134 = vector.broadcast %cst_41 : f32 to vector<8x1xf32>
    %135 = arith.subf %134, %15 : vector<8x1xf32>
    %136 = vector.broadcast %135 : vector<8x1xf32> to vector<8x5xf32>
    %137 = arith.cmpf ole, %11, %136 : vector<8x5xf32>
    %cst_42 = arith.constant -1.000000e+10 : f32
    %138 = vector.broadcast %cst_42 : f32 to vector<8x5xf32>
    %139 = arith.select %137, %133, %138 : vector<8x5xi1>, vector<8x5xf32>
    %cst_43 = arith.constant dense<0xFF800000> : vector<8xf32>
    %140 = vector.multi_reduction <maximumf>, %139, %cst_43 [1] : vector<8x5xf32> to vector<8xf32>
    %141 = vector.shape_cast %140 : vector<8xf32> to vector<8x1xf32>
    %142 = vector.broadcast %141 : vector<8x1xf32> to vector<8x5xf32>
    %143 = arith.subf %139, %142 : vector<8x5xf32>
    %144 = math.exp %143 : vector<8x5xf32>
    %cst_44 = arith.constant dense<0.000000e+00> : vector<8xf32>
    %145 = vector.multi_reduction <add>, %144, %cst_44 [1] : vector<8x5xf32> to vector<8xf32>
    %146 = vector.shape_cast %145 : vector<8xf32> to vector<8x1xf32>
    %147 = math.log %146 : vector<8x1xf32>
    %148 = vector.broadcast %147 : vector<8x1xf32> to vector<8x5xf32>
    %149 = arith.subf %143, %148 : vector<8x5xf32>
    %150 = vector.extract_strided_slice %1 {offsets = [0, 10], sizes = [8, 5], strides = [1, 1]} : vector<8x40xf32> to vector<8x5xf32>
    %151 = arith.addf %139, %150 : vector<8x5xf32>
    %cst_45 = arith.constant dense<0xFF800000> : vector<8xf32>
    %152 = vector.multi_reduction <maximumf>, %151, %cst_45 [1] : vector<8x5xf32> to vector<8xf32>
    %153 = vector.shape_cast %152 : vector<8xf32> to vector<8x1xf32>
    %154 = vector.broadcast %153 : vector<8x1xf32> to vector<8x5xf32>
    %155 = arith.cmpf oge, %151, %154 : vector<8x5xf32>
    %cst_46 = arith.constant 5.000000e+00 : f32
    %156 = vector.broadcast %cst_46 : f32 to vector<8x5xf32>
    %157 = arith.select %155, %11, %156 : vector<8x5xi1>, vector<8x5xf32>
    %cst_47 = arith.constant dense<0x7F800000> : vector<8xf32>
    %158 = vector.multi_reduction <minimumf>, %157, %cst_47 [1] : vector<8x5xf32> to vector<8xf32>
    %159 = vector.shape_cast %158 : vector<8xf32> to vector<8x1xf32>
    %160 = vector.broadcast %159 : vector<8x1xf32> to vector<8x5xf32>
    %161 = arith.cmpf oeq, %11, %160 : vector<8x5xf32>
    %162 = arith.extui %161 : vector<8x5xi1> to vector<8x5xi32>
    %163 = arith.sitofp %162 : vector<8x5xi32> to vector<8x5xf32>
    %164 = arith.mulf %163, %149 : vector<8x5xf32>
    %cst_48 = arith.constant dense<0.000000e+00> : vector<8xf32>
    %165 = vector.multi_reduction <add>, %164, %cst_48 [1] : vector<8x5xf32> to vector<8xf32>
    %166 = vector.shape_cast %165 : vector<8xf32> to vector<8x1xf32>
    %167 = vector.extract_strided_slice %2 {offsets = [0, 2], sizes = [8, 1], strides = [1, 1]} : vector<8x8xf32> to vector<8x1xf32>
    %cst_49 = arith.constant 1.000000e-01 : f32
    %168 = vector.broadcast %cst_49 : f32 to vector<8x1xf32>
    %169 = arith.cmpf olt, %167, %168 : vector<8x1xf32>
    %170 = arith.extui %169 : vector<8x1xi1> to vector<8x1xi32>
    %171 = arith.sitofp %170 : vector<8x1xi32> to vector<8x1xf32>
    %172 = vector.extract_strided_slice %3 {offsets = [0, 2], sizes = [8, 1], strides = [1, 1]} : vector<8x8xf32> to vector<8x1xf32>
    %173 = arith.mulf %171, %172 : vector<8x1xf32>
    %cst_50 = arith.constant 1.000000e+00 : f32
    %174 = vector.broadcast %cst_50 : f32 to vector<8x1xf32>
    %175 = arith.subf %174, %171 : vector<8x1xf32>
    %176 = arith.mulf %175, %159 : vector<8x1xf32>
    %177 = arith.addf %173, %176 : vector<8x1xf32>
    %178 = vector.extract_strided_slice %4 {offsets = [0, 2], sizes = [8, 1], strides = [1, 1]} : vector<8x8xf32> to vector<8x1xf32>
    %179 = arith.mulf %177, %178 : vector<8x1xf32>
    %180 = arith.mulf %166, %178 : vector<8x1xf32>
    %cst_51 = arith.constant 2.000000e+00 : f32
    %181 = vector.broadcast %cst_51 : f32 to vector<8x8xf32>
    %182 = arith.cmpf oeq, %13, %181 : vector<8x8xf32>
    %183 = arith.extui %182 : vector<8x8xi1> to vector<8x8xi32>
    %184 = arith.sitofp %183 : vector<8x8xi32> to vector<8x8xf32>
    %185 = vector.broadcast %179 : vector<8x1xf32> to vector<8x8xf32>
    %186 = arith.mulf %185, %184 : vector<8x8xf32>
    %187 = arith.addf %131, %186 : vector<8x8xf32>
    %188 = arith.addf %132, %180 : vector<8x1xf32>
    %189 = arith.addf %15, %179 : vector<8x1xf32>
    %190 = vector.extract_strided_slice %9 {offsets = [0, 15], sizes = [8, 5], strides = [1, 1]} : vector<8x40xf32> to vector<8x5xf32>
    %cst_52 = arith.constant 4.000000e+00 : f32
    %191 = vector.broadcast %cst_52 : f32 to vector<8x1xf32>
    %192 = arith.subf %191, %189 : vector<8x1xf32>
    %193 = vector.broadcast %192 : vector<8x1xf32> to vector<8x5xf32>
    %194 = arith.cmpf ole, %11, %193 : vector<8x5xf32>
    %cst_53 = arith.constant -1.000000e+10 : f32
    %195 = vector.broadcast %cst_53 : f32 to vector<8x5xf32>
    %196 = arith.select %194, %190, %195 : vector<8x5xi1>, vector<8x5xf32>
    %cst_54 = arith.constant dense<0xFF800000> : vector<8xf32>
    %197 = vector.multi_reduction <maximumf>, %196, %cst_54 [1] : vector<8x5xf32> to vector<8xf32>
    %198 = vector.shape_cast %197 : vector<8xf32> to vector<8x1xf32>
    %199 = vector.broadcast %198 : vector<8x1xf32> to vector<8x5xf32>
    %200 = arith.subf %196, %199 : vector<8x5xf32>
    %201 = math.exp %200 : vector<8x5xf32>
    %cst_55 = arith.constant dense<0.000000e+00> : vector<8xf32>
    %202 = vector.multi_reduction <add>, %201, %cst_55 [1] : vector<8x5xf32> to vector<8xf32>
    %203 = vector.shape_cast %202 : vector<8xf32> to vector<8x1xf32>
    %204 = math.log %203 : vector<8x1xf32>
    %205 = vector.broadcast %204 : vector<8x1xf32> to vector<8x5xf32>
    %206 = arith.subf %200, %205 : vector<8x5xf32>
    %207 = vector.extract_strided_slice %1 {offsets = [0, 15], sizes = [8, 5], strides = [1, 1]} : vector<8x40xf32> to vector<8x5xf32>
    %208 = arith.addf %196, %207 : vector<8x5xf32>
    %cst_56 = arith.constant dense<0xFF800000> : vector<8xf32>
    %209 = vector.multi_reduction <maximumf>, %208, %cst_56 [1] : vector<8x5xf32> to vector<8xf32>
    %210 = vector.shape_cast %209 : vector<8xf32> to vector<8x1xf32>
    %211 = vector.broadcast %210 : vector<8x1xf32> to vector<8x5xf32>
    %212 = arith.cmpf oge, %208, %211 : vector<8x5xf32>
    %cst_57 = arith.constant 5.000000e+00 : f32
    %213 = vector.broadcast %cst_57 : f32 to vector<8x5xf32>
    %214 = arith.select %212, %11, %213 : vector<8x5xi1>, vector<8x5xf32>
    %cst_58 = arith.constant dense<0x7F800000> : vector<8xf32>
    %215 = vector.multi_reduction <minimumf>, %214, %cst_58 [1] : vector<8x5xf32> to vector<8xf32>
    %216 = vector.shape_cast %215 : vector<8xf32> to vector<8x1xf32>
    %217 = vector.broadcast %216 : vector<8x1xf32> to vector<8x5xf32>
    %218 = arith.cmpf oeq, %11, %217 : vector<8x5xf32>
    %219 = arith.extui %218 : vector<8x5xi1> to vector<8x5xi32>
    %220 = arith.sitofp %219 : vector<8x5xi32> to vector<8x5xf32>
    %221 = arith.mulf %220, %206 : vector<8x5xf32>
    %cst_59 = arith.constant dense<0.000000e+00> : vector<8xf32>
    %222 = vector.multi_reduction <add>, %221, %cst_59 [1] : vector<8x5xf32> to vector<8xf32>
    %223 = vector.shape_cast %222 : vector<8xf32> to vector<8x1xf32>
    %224 = vector.extract_strided_slice %2 {offsets = [0, 3], sizes = [8, 1], strides = [1, 1]} : vector<8x8xf32> to vector<8x1xf32>
    %cst_60 = arith.constant 1.000000e-01 : f32
    %225 = vector.broadcast %cst_60 : f32 to vector<8x1xf32>
    %226 = arith.cmpf olt, %224, %225 : vector<8x1xf32>
    %227 = arith.extui %226 : vector<8x1xi1> to vector<8x1xi32>
    %228 = arith.sitofp %227 : vector<8x1xi32> to vector<8x1xf32>
    %229 = vector.extract_strided_slice %3 {offsets = [0, 3], sizes = [8, 1], strides = [1, 1]} : vector<8x8xf32> to vector<8x1xf32>
    %230 = arith.mulf %228, %229 : vector<8x1xf32>
    %cst_61 = arith.constant 1.000000e+00 : f32
    %231 = vector.broadcast %cst_61 : f32 to vector<8x1xf32>
    %232 = arith.subf %231, %228 : vector<8x1xf32>
    %233 = arith.mulf %232, %216 : vector<8x1xf32>
    %234 = arith.addf %230, %233 : vector<8x1xf32>
    %235 = vector.extract_strided_slice %4 {offsets = [0, 3], sizes = [8, 1], strides = [1, 1]} : vector<8x8xf32> to vector<8x1xf32>
    %236 = arith.mulf %234, %235 : vector<8x1xf32>
    %237 = arith.mulf %223, %235 : vector<8x1xf32>
    %cst_62 = arith.constant 3.000000e+00 : f32
    %238 = vector.broadcast %cst_62 : f32 to vector<8x8xf32>
    %239 = arith.cmpf oeq, %13, %238 : vector<8x8xf32>
    %240 = arith.extui %239 : vector<8x8xi1> to vector<8x8xi32>
    %241 = arith.sitofp %240 : vector<8x8xi32> to vector<8x8xf32>
    %242 = vector.broadcast %236 : vector<8x1xf32> to vector<8x8xf32>
    %243 = arith.mulf %242, %241 : vector<8x8xf32>
    %244 = arith.addf %187, %243 : vector<8x8xf32>
    %245 = arith.addf %188, %237 : vector<8x1xf32>
    %246 = vector.extract_strided_slice %9 {offsets = [0, 20], sizes = [8, 5], strides = [1, 1]} : vector<8x40xf32> to vector<8x5xf32>
    %cst_63 = arith.constant 4.000000e+00 : f32
    %247 = vector.broadcast %cst_63 : f32 to vector<8x1xf32>
    %248 = arith.subf %247, %16 : vector<8x1xf32>
    %249 = vector.broadcast %248 : vector<8x1xf32> to vector<8x5xf32>
    %250 = arith.cmpf ole, %11, %249 : vector<8x5xf32>
    %cst_64 = arith.constant -1.000000e+10 : f32
    %251 = vector.broadcast %cst_64 : f32 to vector<8x5xf32>
    %252 = arith.select %250, %246, %251 : vector<8x5xi1>, vector<8x5xf32>
    %cst_65 = arith.constant dense<0xFF800000> : vector<8xf32>
    %253 = vector.multi_reduction <maximumf>, %252, %cst_65 [1] : vector<8x5xf32> to vector<8xf32>
    %254 = vector.shape_cast %253 : vector<8xf32> to vector<8x1xf32>
    %255 = vector.broadcast %254 : vector<8x1xf32> to vector<8x5xf32>
    %256 = arith.subf %252, %255 : vector<8x5xf32>
    %257 = math.exp %256 : vector<8x5xf32>
    %cst_66 = arith.constant dense<0.000000e+00> : vector<8xf32>
    %258 = vector.multi_reduction <add>, %257, %cst_66 [1] : vector<8x5xf32> to vector<8xf32>
    %259 = vector.shape_cast %258 : vector<8xf32> to vector<8x1xf32>
    %260 = math.log %259 : vector<8x1xf32>
    %261 = vector.broadcast %260 : vector<8x1xf32> to vector<8x5xf32>
    %262 = arith.subf %256, %261 : vector<8x5xf32>
    %263 = vector.extract_strided_slice %1 {offsets = [0, 20], sizes = [8, 5], strides = [1, 1]} : vector<8x40xf32> to vector<8x5xf32>
    %264 = arith.addf %252, %263 : vector<8x5xf32>
    %cst_67 = arith.constant dense<0xFF800000> : vector<8xf32>
    %265 = vector.multi_reduction <maximumf>, %264, %cst_67 [1] : vector<8x5xf32> to vector<8xf32>
    %266 = vector.shape_cast %265 : vector<8xf32> to vector<8x1xf32>
    %267 = vector.broadcast %266 : vector<8x1xf32> to vector<8x5xf32>
    %268 = arith.cmpf oge, %264, %267 : vector<8x5xf32>
    %cst_68 = arith.constant 5.000000e+00 : f32
    %269 = vector.broadcast %cst_68 : f32 to vector<8x5xf32>
    %270 = arith.select %268, %11, %269 : vector<8x5xi1>, vector<8x5xf32>
    %cst_69 = arith.constant dense<0x7F800000> : vector<8xf32>
    %271 = vector.multi_reduction <minimumf>, %270, %cst_69 [1] : vector<8x5xf32> to vector<8xf32>
    %272 = vector.shape_cast %271 : vector<8xf32> to vector<8x1xf32>
    %273 = vector.broadcast %272 : vector<8x1xf32> to vector<8x5xf32>
    %274 = arith.cmpf oeq, %11, %273 : vector<8x5xf32>
    %275 = arith.extui %274 : vector<8x5xi1> to vector<8x5xi32>
    %276 = arith.sitofp %275 : vector<8x5xi32> to vector<8x5xf32>
    %277 = arith.mulf %276, %262 : vector<8x5xf32>
    %cst_70 = arith.constant dense<0.000000e+00> : vector<8xf32>
    %278 = vector.multi_reduction <add>, %277, %cst_70 [1] : vector<8x5xf32> to vector<8xf32>
    %279 = vector.shape_cast %278 : vector<8xf32> to vector<8x1xf32>
    %280 = vector.extract_strided_slice %2 {offsets = [0, 4], sizes = [8, 1], strides = [1, 1]} : vector<8x8xf32> to vector<8x1xf32>
    %cst_71 = arith.constant 1.000000e-01 : f32
    %281 = vector.broadcast %cst_71 : f32 to vector<8x1xf32>
    %282 = arith.cmpf olt, %280, %281 : vector<8x1xf32>
    %283 = arith.extui %282 : vector<8x1xi1> to vector<8x1xi32>
    %284 = arith.sitofp %283 : vector<8x1xi32> to vector<8x1xf32>
    %285 = vector.extract_strided_slice %3 {offsets = [0, 4], sizes = [8, 1], strides = [1, 1]} : vector<8x8xf32> to vector<8x1xf32>
    %286 = arith.mulf %284, %285 : vector<8x1xf32>
    %cst_72 = arith.constant 1.000000e+00 : f32
    %287 = vector.broadcast %cst_72 : f32 to vector<8x1xf32>
    %288 = arith.subf %287, %284 : vector<8x1xf32>
    %289 = arith.mulf %288, %272 : vector<8x1xf32>
    %290 = arith.addf %286, %289 : vector<8x1xf32>
    %291 = vector.extract_strided_slice %4 {offsets = [0, 4], sizes = [8, 1], strides = [1, 1]} : vector<8x8xf32> to vector<8x1xf32>
    %292 = arith.mulf %290, %291 : vector<8x1xf32>
    %293 = arith.mulf %279, %291 : vector<8x1xf32>
    %cst_73 = arith.constant 4.000000e+00 : f32
    %294 = vector.broadcast %cst_73 : f32 to vector<8x8xf32>
    %295 = arith.cmpf oeq, %13, %294 : vector<8x8xf32>
    %296 = arith.extui %295 : vector<8x8xi1> to vector<8x8xi32>
    %297 = arith.sitofp %296 : vector<8x8xi32> to vector<8x8xf32>
    %298 = vector.broadcast %292 : vector<8x1xf32> to vector<8x8xf32>
    %299 = arith.mulf %298, %297 : vector<8x8xf32>
    %300 = arith.addf %244, %299 : vector<8x8xf32>
    %301 = arith.addf %245, %293 : vector<8x1xf32>
    %302 = arith.addf %16, %292 : vector<8x1xf32>
    %303 = vector.extract_strided_slice %9 {offsets = [0, 25], sizes = [8, 5], strides = [1, 1]} : vector<8x40xf32> to vector<8x5xf32>
    %cst_74 = arith.constant 4.000000e+00 : f32
    %304 = vector.broadcast %cst_74 : f32 to vector<8x1xf32>
    %305 = arith.subf %304, %302 : vector<8x1xf32>
    %306 = vector.broadcast %305 : vector<8x1xf32> to vector<8x5xf32>
    %307 = arith.cmpf ole, %11, %306 : vector<8x5xf32>
    %cst_75 = arith.constant -1.000000e+10 : f32
    %308 = vector.broadcast %cst_75 : f32 to vector<8x5xf32>
    %309 = arith.select %307, %303, %308 : vector<8x5xi1>, vector<8x5xf32>
    %cst_76 = arith.constant dense<0xFF800000> : vector<8xf32>
    %310 = vector.multi_reduction <maximumf>, %309, %cst_76 [1] : vector<8x5xf32> to vector<8xf32>
    %311 = vector.shape_cast %310 : vector<8xf32> to vector<8x1xf32>
    %312 = vector.broadcast %311 : vector<8x1xf32> to vector<8x5xf32>
    %313 = arith.subf %309, %312 : vector<8x5xf32>
    %314 = math.exp %313 : vector<8x5xf32>
    %cst_77 = arith.constant dense<0.000000e+00> : vector<8xf32>
    %315 = vector.multi_reduction <add>, %314, %cst_77 [1] : vector<8x5xf32> to vector<8xf32>
    %316 = vector.shape_cast %315 : vector<8xf32> to vector<8x1xf32>
    %317 = math.log %316 : vector<8x1xf32>
    %318 = vector.broadcast %317 : vector<8x1xf32> to vector<8x5xf32>
    %319 = arith.subf %313, %318 : vector<8x5xf32>
    %320 = vector.extract_strided_slice %1 {offsets = [0, 25], sizes = [8, 5], strides = [1, 1]} : vector<8x40xf32> to vector<8x5xf32>
    %321 = arith.addf %309, %320 : vector<8x5xf32>
    %cst_78 = arith.constant dense<0xFF800000> : vector<8xf32>
    %322 = vector.multi_reduction <maximumf>, %321, %cst_78 [1] : vector<8x5xf32> to vector<8xf32>
    %323 = vector.shape_cast %322 : vector<8xf32> to vector<8x1xf32>
    %324 = vector.broadcast %323 : vector<8x1xf32> to vector<8x5xf32>
    %325 = arith.cmpf oge, %321, %324 : vector<8x5xf32>
    %cst_79 = arith.constant 5.000000e+00 : f32
    %326 = vector.broadcast %cst_79 : f32 to vector<8x5xf32>
    %327 = arith.select %325, %11, %326 : vector<8x5xi1>, vector<8x5xf32>
    %cst_80 = arith.constant dense<0x7F800000> : vector<8xf32>
    %328 = vector.multi_reduction <minimumf>, %327, %cst_80 [1] : vector<8x5xf32> to vector<8xf32>
    %329 = vector.shape_cast %328 : vector<8xf32> to vector<8x1xf32>
    %330 = vector.broadcast %329 : vector<8x1xf32> to vector<8x5xf32>
    %331 = arith.cmpf oeq, %11, %330 : vector<8x5xf32>
    %332 = arith.extui %331 : vector<8x5xi1> to vector<8x5xi32>
    %333 = arith.sitofp %332 : vector<8x5xi32> to vector<8x5xf32>
    %334 = arith.mulf %333, %319 : vector<8x5xf32>
    %cst_81 = arith.constant dense<0.000000e+00> : vector<8xf32>
    %335 = vector.multi_reduction <add>, %334, %cst_81 [1] : vector<8x5xf32> to vector<8xf32>
    %336 = vector.shape_cast %335 : vector<8xf32> to vector<8x1xf32>
    %337 = vector.extract_strided_slice %2 {offsets = [0, 5], sizes = [8, 1], strides = [1, 1]} : vector<8x8xf32> to vector<8x1xf32>
    %cst_82 = arith.constant 1.000000e-01 : f32
    %338 = vector.broadcast %cst_82 : f32 to vector<8x1xf32>
    %339 = arith.cmpf olt, %337, %338 : vector<8x1xf32>
    %340 = arith.extui %339 : vector<8x1xi1> to vector<8x1xi32>
    %341 = arith.sitofp %340 : vector<8x1xi32> to vector<8x1xf32>
    %342 = vector.extract_strided_slice %3 {offsets = [0, 5], sizes = [8, 1], strides = [1, 1]} : vector<8x8xf32> to vector<8x1xf32>
    %343 = arith.mulf %341, %342 : vector<8x1xf32>
    %cst_83 = arith.constant 1.000000e+00 : f32
    %344 = vector.broadcast %cst_83 : f32 to vector<8x1xf32>
    %345 = arith.subf %344, %341 : vector<8x1xf32>
    %346 = arith.mulf %345, %329 : vector<8x1xf32>
    %347 = arith.addf %343, %346 : vector<8x1xf32>
    %348 = vector.extract_strided_slice %4 {offsets = [0, 5], sizes = [8, 1], strides = [1, 1]} : vector<8x8xf32> to vector<8x1xf32>
    %349 = arith.mulf %347, %348 : vector<8x1xf32>
    %350 = arith.mulf %336, %348 : vector<8x1xf32>
    %cst_84 = arith.constant 5.000000e+00 : f32
    %351 = vector.broadcast %cst_84 : f32 to vector<8x8xf32>
    %352 = arith.cmpf oeq, %13, %351 : vector<8x8xf32>
    %353 = arith.extui %352 : vector<8x8xi1> to vector<8x8xi32>
    %354 = arith.sitofp %353 : vector<8x8xi32> to vector<8x8xf32>
    %355 = vector.broadcast %349 : vector<8x1xf32> to vector<8x8xf32>
    %356 = arith.mulf %355, %354 : vector<8x8xf32>
    %357 = arith.addf %300, %356 : vector<8x8xf32>
    %358 = arith.addf %301, %350 : vector<8x1xf32>
    %359 = vector.extract_strided_slice %9 {offsets = [0, 30], sizes = [8, 5], strides = [1, 1]} : vector<8x40xf32> to vector<8x5xf32>
    %cst_85 = arith.constant 4.000000e+00 : f32
    %360 = vector.broadcast %cst_85 : f32 to vector<8x1xf32>
    %361 = arith.subf %360, %17 : vector<8x1xf32>
    %362 = vector.broadcast %361 : vector<8x1xf32> to vector<8x5xf32>
    %363 = arith.cmpf ole, %11, %362 : vector<8x5xf32>
    %cst_86 = arith.constant -1.000000e+10 : f32
    %364 = vector.broadcast %cst_86 : f32 to vector<8x5xf32>
    %365 = arith.select %363, %359, %364 : vector<8x5xi1>, vector<8x5xf32>
    %cst_87 = arith.constant dense<0xFF800000> : vector<8xf32>
    %366 = vector.multi_reduction <maximumf>, %365, %cst_87 [1] : vector<8x5xf32> to vector<8xf32>
    %367 = vector.shape_cast %366 : vector<8xf32> to vector<8x1xf32>
    %368 = vector.broadcast %367 : vector<8x1xf32> to vector<8x5xf32>
    %369 = arith.subf %365, %368 : vector<8x5xf32>
    %370 = math.exp %369 : vector<8x5xf32>
    %cst_88 = arith.constant dense<0.000000e+00> : vector<8xf32>
    %371 = vector.multi_reduction <add>, %370, %cst_88 [1] : vector<8x5xf32> to vector<8xf32>
    %372 = vector.shape_cast %371 : vector<8xf32> to vector<8x1xf32>
    %373 = math.log %372 : vector<8x1xf32>
    %374 = vector.broadcast %373 : vector<8x1xf32> to vector<8x5xf32>
    %375 = arith.subf %369, %374 : vector<8x5xf32>
    %376 = vector.extract_strided_slice %1 {offsets = [0, 30], sizes = [8, 5], strides = [1, 1]} : vector<8x40xf32> to vector<8x5xf32>
    %377 = arith.addf %365, %376 : vector<8x5xf32>
    %cst_89 = arith.constant dense<0xFF800000> : vector<8xf32>
    %378 = vector.multi_reduction <maximumf>, %377, %cst_89 [1] : vector<8x5xf32> to vector<8xf32>
    %379 = vector.shape_cast %378 : vector<8xf32> to vector<8x1xf32>
    %380 = vector.broadcast %379 : vector<8x1xf32> to vector<8x5xf32>
    %381 = arith.cmpf oge, %377, %380 : vector<8x5xf32>
    %cst_90 = arith.constant 5.000000e+00 : f32
    %382 = vector.broadcast %cst_90 : f32 to vector<8x5xf32>
    %383 = arith.select %381, %11, %382 : vector<8x5xi1>, vector<8x5xf32>
    %cst_91 = arith.constant dense<0x7F800000> : vector<8xf32>
    %384 = vector.multi_reduction <minimumf>, %383, %cst_91 [1] : vector<8x5xf32> to vector<8xf32>
    %385 = vector.shape_cast %384 : vector<8xf32> to vector<8x1xf32>
    %386 = vector.broadcast %385 : vector<8x1xf32> to vector<8x5xf32>
    %387 = arith.cmpf oeq, %11, %386 : vector<8x5xf32>
    %388 = arith.extui %387 : vector<8x5xi1> to vector<8x5xi32>
    %389 = arith.sitofp %388 : vector<8x5xi32> to vector<8x5xf32>
    %390 = arith.mulf %389, %375 : vector<8x5xf32>
    %cst_92 = arith.constant dense<0.000000e+00> : vector<8xf32>
    %391 = vector.multi_reduction <add>, %390, %cst_92 [1] : vector<8x5xf32> to vector<8xf32>
    %392 = vector.shape_cast %391 : vector<8xf32> to vector<8x1xf32>
    %393 = vector.extract_strided_slice %2 {offsets = [0, 6], sizes = [8, 1], strides = [1, 1]} : vector<8x8xf32> to vector<8x1xf32>
    %cst_93 = arith.constant 1.000000e-01 : f32
    %394 = vector.broadcast %cst_93 : f32 to vector<8x1xf32>
    %395 = arith.cmpf olt, %393, %394 : vector<8x1xf32>
    %396 = arith.extui %395 : vector<8x1xi1> to vector<8x1xi32>
    %397 = arith.sitofp %396 : vector<8x1xi32> to vector<8x1xf32>
    %398 = vector.extract_strided_slice %3 {offsets = [0, 6], sizes = [8, 1], strides = [1, 1]} : vector<8x8xf32> to vector<8x1xf32>
    %399 = arith.mulf %397, %398 : vector<8x1xf32>
    %cst_94 = arith.constant 1.000000e+00 : f32
    %400 = vector.broadcast %cst_94 : f32 to vector<8x1xf32>
    %401 = arith.subf %400, %397 : vector<8x1xf32>
    %402 = arith.mulf %401, %385 : vector<8x1xf32>
    %403 = arith.addf %399, %402 : vector<8x1xf32>
    %404 = vector.extract_strided_slice %4 {offsets = [0, 6], sizes = [8, 1], strides = [1, 1]} : vector<8x8xf32> to vector<8x1xf32>
    %405 = arith.mulf %403, %404 : vector<8x1xf32>
    %406 = arith.mulf %392, %404 : vector<8x1xf32>
    %cst_95 = arith.constant 6.000000e+00 : f32
    %407 = vector.broadcast %cst_95 : f32 to vector<8x8xf32>
    %408 = arith.cmpf oeq, %13, %407 : vector<8x8xf32>
    %409 = arith.extui %408 : vector<8x8xi1> to vector<8x8xi32>
    %410 = arith.sitofp %409 : vector<8x8xi32> to vector<8x8xf32>
    %411 = vector.broadcast %405 : vector<8x1xf32> to vector<8x8xf32>
    %412 = arith.mulf %411, %410 : vector<8x8xf32>
    %413 = arith.addf %357, %412 : vector<8x8xf32>
    %414 = arith.addf %358, %406 : vector<8x1xf32>
    %415 = arith.addf %17, %405 : vector<8x1xf32>
    %416 = vector.extract_strided_slice %9 {offsets = [0, 35], sizes = [8, 5], strides = [1, 1]} : vector<8x40xf32> to vector<8x5xf32>
    %cst_96 = arith.constant 4.000000e+00 : f32
    %417 = vector.broadcast %cst_96 : f32 to vector<8x1xf32>
    %418 = arith.subf %417, %415 : vector<8x1xf32>
    %419 = vector.broadcast %418 : vector<8x1xf32> to vector<8x5xf32>
    %420 = arith.cmpf ole, %11, %419 : vector<8x5xf32>
    %cst_97 = arith.constant -1.000000e+10 : f32
    %421 = vector.broadcast %cst_97 : f32 to vector<8x5xf32>
    %422 = arith.select %420, %416, %421 : vector<8x5xi1>, vector<8x5xf32>
    %cst_98 = arith.constant dense<0xFF800000> : vector<8xf32>
    %423 = vector.multi_reduction <maximumf>, %422, %cst_98 [1] : vector<8x5xf32> to vector<8xf32>
    %424 = vector.shape_cast %423 : vector<8xf32> to vector<8x1xf32>
    %425 = vector.broadcast %424 : vector<8x1xf32> to vector<8x5xf32>
    %426 = arith.subf %422, %425 : vector<8x5xf32>
    %427 = math.exp %426 : vector<8x5xf32>
    %cst_99 = arith.constant dense<0.000000e+00> : vector<8xf32>
    %428 = vector.multi_reduction <add>, %427, %cst_99 [1] : vector<8x5xf32> to vector<8xf32>
    %429 = vector.shape_cast %428 : vector<8xf32> to vector<8x1xf32>
    %430 = math.log %429 : vector<8x1xf32>
    %431 = vector.broadcast %430 : vector<8x1xf32> to vector<8x5xf32>
    %432 = arith.subf %426, %431 : vector<8x5xf32>
    %433 = vector.extract_strided_slice %1 {offsets = [0, 35], sizes = [8, 5], strides = [1, 1]} : vector<8x40xf32> to vector<8x5xf32>
    %434 = arith.addf %422, %433 : vector<8x5xf32>
    %cst_100 = arith.constant dense<0xFF800000> : vector<8xf32>
    %435 = vector.multi_reduction <maximumf>, %434, %cst_100 [1] : vector<8x5xf32> to vector<8xf32>
    %436 = vector.shape_cast %435 : vector<8xf32> to vector<8x1xf32>
    %437 = vector.broadcast %436 : vector<8x1xf32> to vector<8x5xf32>
    %438 = arith.cmpf oge, %434, %437 : vector<8x5xf32>
    %cst_101 = arith.constant 5.000000e+00 : f32
    %439 = vector.broadcast %cst_101 : f32 to vector<8x5xf32>
    %440 = arith.select %438, %11, %439 : vector<8x5xi1>, vector<8x5xf32>
    %cst_102 = arith.constant dense<0x7F800000> : vector<8xf32>
    %441 = vector.multi_reduction <minimumf>, %440, %cst_102 [1] : vector<8x5xf32> to vector<8xf32>
    %442 = vector.shape_cast %441 : vector<8xf32> to vector<8x1xf32>
    %443 = vector.broadcast %442 : vector<8x1xf32> to vector<8x5xf32>
    %444 = arith.cmpf oeq, %11, %443 : vector<8x5xf32>
    %445 = arith.extui %444 : vector<8x5xi1> to vector<8x5xi32>
    %446 = arith.sitofp %445 : vector<8x5xi32> to vector<8x5xf32>
    %447 = arith.mulf %446, %432 : vector<8x5xf32>
    %cst_103 = arith.constant dense<0.000000e+00> : vector<8xf32>
    %448 = vector.multi_reduction <add>, %447, %cst_103 [1] : vector<8x5xf32> to vector<8xf32>
    %449 = vector.shape_cast %448 : vector<8xf32> to vector<8x1xf32>
    %450 = vector.extract_strided_slice %2 {offsets = [0, 7], sizes = [8, 1], strides = [1, 1]} : vector<8x8xf32> to vector<8x1xf32>
    %cst_104 = arith.constant 1.000000e-01 : f32
    %451 = vector.broadcast %cst_104 : f32 to vector<8x1xf32>
    %452 = arith.cmpf olt, %450, %451 : vector<8x1xf32>
    %453 = arith.extui %452 : vector<8x1xi1> to vector<8x1xi32>
    %454 = arith.sitofp %453 : vector<8x1xi32> to vector<8x1xf32>
    %455 = vector.extract_strided_slice %3 {offsets = [0, 7], sizes = [8, 1], strides = [1, 1]} : vector<8x8xf32> to vector<8x1xf32>
    %456 = arith.mulf %454, %455 : vector<8x1xf32>
    %cst_105 = arith.constant 1.000000e+00 : f32
    %457 = vector.broadcast %cst_105 : f32 to vector<8x1xf32>
    %458 = arith.subf %457, %454 : vector<8x1xf32>
    %459 = arith.mulf %458, %442 : vector<8x1xf32>
    %460 = arith.addf %456, %459 : vector<8x1xf32>
    %461 = vector.extract_strided_slice %4 {offsets = [0, 7], sizes = [8, 1], strides = [1, 1]} : vector<8x8xf32> to vector<8x1xf32>
    %462 = arith.mulf %460, %461 : vector<8x1xf32>
    %463 = arith.mulf %449, %461 : vector<8x1xf32>
    %cst_106 = arith.constant 7.000000e+00 : f32
    %464 = vector.broadcast %cst_106 : f32 to vector<8x8xf32>
    %465 = arith.cmpf oeq, %13, %464 : vector<8x8xf32>
    %466 = arith.extui %465 : vector<8x8xi1> to vector<8x8xi32>
    %467 = arith.sitofp %466 : vector<8x8xi32> to vector<8x8xf32>
    %468 = vector.broadcast %462 : vector<8x1xf32> to vector<8x8xf32>
    %469 = arith.mulf %468, %467 : vector<8x8xf32>
    %470 = arith.addf %413, %469 : vector<8x8xf32>
    %471 = arith.addf %414, %463 : vector<8x1xf32>
    %c0_107 = arith.constant 0 : index
    %c0_108 = arith.constant 0 : index
    %472 = vector.load %arg8[%c0_107, %c0_108] : memref<8x8xf32, #tpu.memory_space<vmem>>, vector<8x8xf32>
    tpu.vector_store %arg8[%c0_107, %c0_108], %470 {strides = array<i32>} : memref<8x8xf32, #tpu.memory_space<vmem>>, vector<8x8xf32>,
    %c0_109 = arith.constant 0 : index
    %c0_110 = arith.constant 0 : index
    %473 = vector.load %arg9[%c0_109, %c0_110] : memref<8x1xf32, #tpu.memory_space<vmem>>, vector<8x1xf32>
    tpu.vector_store %arg9[%c0_109, %c0_110], %471 {strides = array<i32>} : memref<8x1xf32, #tpu.memory_space<vmem>>, vector<8x1xf32>,
    return
  }
  func.func @transform_0(%arg0: i32) -> (i32, i32) {
    %c0_i32 = arith.constant 0 : i32
    %c0_i32_0 = arith.constant 0 : i32
    return %arg0, %c0_i32 : i32, i32
  }
  func.func @transform_1(%arg0: i32) -> (i32, i32) {
    %c0_i32 = arith.constant 0 : i32
    %c0_i32_0 = arith.constant 0 : i32
    %c0_i32_1 = arith.constant 0 : i32
    return %c0_i32, %c0_i32_0 : i32, i32
  }
  func.func @transform_2(%arg0: i32) -> (i32, i32) {
    %c0_i32 = arith.constant 0 : i32
    %c0_i32_0 = arith.constant 0 : i32
    %c0_i32_1 = arith.constant 0 : i32
    return %c0_i32, %c0_i32_0 : i32, i32
  }
  func.func @transform_3(%arg0: i32) -> (i32, i32) {
    %c0_i32 = arith.constant 0 : i32
    %c0_i32_0 = arith.constant 0 : i32
    return %arg0, %c0_i32 : i32, i32
  }
  func.func @transform_4(%arg0: i32) -> (i32, i32) {
    %c0_i32 = arith.constant 0 : i32
    %c0_i32_0 = arith.constant 0 : i32
    return %arg0, %c0_i32 : i32, i32
  }
  func.func @transform_5(%arg0: i32) -> (i32, i32) {
    %c0_i32 = arith.constant 0 : i32
    %c0_i32_0 = arith.constant 0 : i32
    return %arg0, %c0_i32 : i32, i32
  }
  func.func @transform_6(%arg0: i32) -> (i32, i32) {
    %c0_i32 = arith.constant 0 : i32
    %c0_i32_0 = arith.constant 0 : i32
    return %arg0, %c0_i32 : i32, i32
  }
  func.func @transform_7(%arg0: i32) -> (i32, i32) {
    %c0_i32 = arith.constant 0 : i32
    %c0_i32_0 = arith.constant 0 : i32
    return %arg0, %c0_i32 : i32, i32
  }
  func.func @transform_8(%arg0: i32) -> (i32, i32) {
    %c0_i32 = arith.constant 0 : i32
    %c0_i32_0 = arith.constant 0 : i32
    return %arg0, %c0_i32 : i32, i32
  }
}

</mosaic_0001>

<llo_original>
// kernel: tpu_custom_call.1
$region0: #{tpu_custom_call.1}
  #allocation0 [shape = 'u32[]', space=smem, size = 0x4, offset = 0x4, fixed_abs, tag = 'smem constant byte address 0x4 - core index']
  #allocation1 [shape = 'u32[144,128]{1,0:T(1,128)}', space=vmem, size = 0x12000, scoped, tag = 'internal scratch']
  %s0 = inlined_call_operand.hbm [shape: f32[8,32], index: 0, kind: input, shape index: {}]
  %s1 = inlined_call_operand.hbm [shape: f32[32,40], index: 1, kind: input, shape index: {}]
  %s2 = inlined_call_operand.vmem [shape: f32[1,40], index: 2, kind: input, shape index: {}]
  %s3 = inlined_call_operand.hbm [shape: f32[8,40], index: 3, kind: input, shape index: {}]
  %s4 = inlined_call_operand.hbm [shape: f32[8,8], index: 4, kind: input, shape index: {}]
  %s5 = inlined_call_operand.vmem [shape: f32[8,8], index: 5, kind: input, shape index: {}]
  %s6 = inlined_call_operand.hbm [shape: f32[8,8], index: 6, kind: input, shape index: {}]
  %s7 = inlined_call_operand.hbm [shape: f32[8,8], index: 7, kind: output, shape index: {0}]
  %s8 = inlined_call_operand.vmem [shape: f32[8,1], index: 8, kind: output, shape index: {1}]
  %9 = xla_tuple %s7, %s8
  %s10 = sld [smem:[#allocation0]]
  $region66: #{tpu_custom_call.1} parent=0
    _
  %s12 = ssub.s32 1, %s10
  %s13 = scalar_select 0, %s12, %s10
  $region1: #{tpu_custom_call.1} parent=0
    #allocation2 [shape = 'u8[4096]{0}', space=vmem, size = 0x1000, scoped, tag = 'input window, operand 0, single buffered']
    #allocation3 [shape = 's32[1]{0}', space=sflag, size = 0x4, scoped, tag = 'scoped memory for tpu_custom_call.1']
    #allocation4 [shape = 's32[1]{0}', space=sflag, size = 0x4, scoped, tag = 'scoped memory for tpu_custom_call.1']
    #allocation5 [shape = 'u8[16384]{0}', space=vmem, size = 0x4000, scoped, tag = 'input window, operand 1, single buffered']
    #allocation6 [shape = 's32[1]{0}', space=sflag, size = 0x4, scoped, tag = 'scoped memory for tpu_custom_call.1']
    #allocation7 [shape = 'u8[4096]{0}', space=vmem, size = 0x1000, scoped, tag = 'input window, operand 3, single buffered']
    #allocation8 [shape = 'u8[4096]{0}', space=vmem, size = 0x1000, scoped, tag = 'input window, operand 4, single buffered']
    #allocation9 [shape = 's32[1]{0}', space=sflag, size = 0x4, scoped, tag = 'scoped memory for tpu_custom_call.1']
    #allocation10 [shape = 'u8[4096]{0}', space=vmem, size = 0x1000, scoped, tag = 'input window, operand 6, single buffered']
    #allocation11 [shape = 'u8[4096]{0}', space=vmem, size = 0x1000, scoped, tag = 'output window, operand 0, single buffered']
    %14 = vsyncpa [#allocation3], 0
    %15 = vsyncpa [#allocation6], 0
    %16 = vsyncpa [#allocation9], 0
    %17 = vsyncpa [#allocation4], 0
    // Predicated region
    $region2: #{tpu_custom_call.1} parent=1 // pred_check
      _
    $region3: #{tpu_custom_call.1} parent=1 // pred_check_branch
      %19 = sbr.rel (0) target = $region5
    $region4: #{tpu_custom_call.1} parent=1 // pred_region
      %s21 = ssub.s32 128, 128
      %22 = vsyncadd [#allocation3], %s21
      %s24 = sshll.u32 [#allocation2], 4
      %s25 = int_to_ptr.vmem [resolvable:$true] %s24
      %27 = dma.hbm_to_vmem [thread:$0]  %s0, 128, %s25, [#allocation3]
    $region5: #{tpu_custom_call.1} parent=1 // pred_fallthru
      _
    // Predicated region
    $region6: #{tpu_custom_call.1} parent=1 // pred_check
      _
    $region7: #{tpu_custom_call.1} parent=1 // pred_check_branch
      %29 = sbr.rel (0) target = $region9
    $region8: #{tpu_custom_call.1} parent=1 // pred_region
      %s31 = ssub.s32 512, 512
      %32 = vsyncadd [#allocation6], %s31
      %s33 = sshll.u32 [#allocation5], 4
      %s34 = int_to_ptr.vmem [resolvable:$true] %s33
      %39 = dma.hbm_to_vmem [thread:$0]  %s1, 512, %s34, [#allocation6], 128, 128, 8
    $region9: #{tpu_custom_call.1} parent=1 // pred_fallthru
      _
    // Predicated region
    $region10: #{tpu_custom_call.1} parent=1 // pred_check
      _
    $region11: #{tpu_custom_call.1} parent=1 // pred_check_branch
      %41 = sbr.rel (0) target = $region13
    $region12: #{tpu_custom_call.1} parent=1 // pred_region
      _
    $region13: #{tpu_custom_call.1} parent=1 // pred_fallthru
      _
    // Predicated region
    $region14: #{tpu_custom_call.1} parent=1 // pred_check
      _
    $region15: #{tpu_custom_call.1} parent=1 // pred_check_branch
      %43 = sbr.rel (0) target = $region17
    $region16: #{tpu_custom_call.1} parent=1 // pred_region
      %s45 = ssub.s32 128, 128
      %46 = vsyncadd [#allocation6], %s45
      %s48 = sshll.u32 [#allocation7], 4
      %s49 = int_to_ptr.vmem [resolvable:$true] %s48
      %51 = dma.hbm_to_vmem [thread:$0]  %s3, 128, %s49, [#allocation6]
    $region17: #{tpu_custom_call.1} parent=1 // pred_fallthru
      _
    // Predicated region
    $region18: #{tpu_custom_call.1} parent=1 // pred_check
      _
    $region19: #{tpu_custom_call.1} parent=1 // pred_check_branch
      %53 = sbr.rel (0) target = $region21
    $region20: #{tpu_custom_call.1} parent=1 // pred_region
      %s55 = ssub.s32 128, 128
      %56 = vsyncadd [#allocation9], %s55
      %s58 = sshll.u32 [#allocation8], 4
      %s59 = int_to_ptr.vmem [resolvable:$true] %s58
      %61 = dma.hbm_to_vmem [thread:$0]  %s4, 128, %s59, [#allocation9]
    $region21: #{tpu_custom_call.1} parent=1 // pred_fallthru
      _
    // Predicated region
    $region22: #{tpu_custom_call.1} parent=1 // pred_check
      _
    $region23: #{tpu_custom_call.1} parent=1 // pred_check_branch
      %63 = sbr.rel (0) target = $region25
    $region24: #{tpu_custom_call.1} parent=1 // pred_region
      _
    $region25: #{tpu_custom_call.1} parent=1 // pred_fallthru
      _
    // Predicated region
    $region26: #{tpu_custom_call.1} parent=1 // pred_check
      _
    $region27: #{tpu_custom_call.1} parent=1 // pred_check_branch
      %65 = sbr.rel (0) target = $region29
    $region28: #{tpu_custom_call.1} parent=1 // pred_region
      %s67 = ssub.s32 128, 128
      %68 = vsyncadd [#allocation9], %s67
      %s70 = sshll.u32 [#allocation10], 4
      %s71 = int_to_ptr.vmem [resolvable:$true] %s70
      %73 = dma.hbm_to_vmem [thread:$0]  %s6, 128, %s71, [#allocation9]
    $region29: #{tpu_custom_call.1} parent=1 // pred_fallthru
      _
    // Predicated region
    $region30: #{tpu_custom_call.1} parent=1 // pred_check
      _
    $region31: #{tpu_custom_call.1} parent=1 // pred_check_branch
      %75 = sbr.rel (0) target = $region33
    $region32: #{tpu_custom_call.1} parent=1 // pred_region
      %76 = dma.done [#allocation3], 128
    $region33: #{tpu_custom_call.1} parent=1 // pred_fallthru
      _
    // Predicated region
    $region34: #{tpu_custom_call.1} parent=1 // pred_check
      _
    $region35: #{tpu_custom_call.1} parent=1 // pred_check_branch
      %78 = sbr.rel (0) target = $region37
    $region36: #{tpu_custom_call.1} parent=1 // pred_region
      %79 = dma.done [#allocation6], 512
    $region37: #{tpu_custom_call.1} parent=1 // pred_fallthru
      _
    // Predicated region
    $region38: #{tpu_custom_call.1} parent=1 // pred_check
      _
    $region39: #{tpu_custom_call.1} parent=1 // pred_check_branch
      %81 = sbr.rel (0) target = $region41
    $region40: #{tpu_custom_call.1} parent=1 // pred_region
      %82 = dma.done [#allocation6], 128
    $region41: #{tpu_custom_call.1} parent=1 // pred_fallthru
      _
    // Predicated region
    $region42: #{tpu_custom_call.1} parent=1 // pred_check
      _
    $region43: #{tpu_custom_call.1} parent=1 // pred_check_branch
      %84 = sbr.rel (0) target = $region45
    $region44: #{tpu_custom_call.1} parent=1 // pred_region
      %85 = dma.done [#allocation9], 128
    $region45: #{tpu_custom_call.1} parent=1 // pred_fallthru
      _
    // Predicated region
    $region46: #{tpu_custom_call.1} parent=1 // pred_check
      _
    $region47: #{tpu_custom_call.1} parent=1 // pred_check_branch
      %87 = sbr.rel (0) target = $region49
    $region48: #{tpu_custom_call.1} parent=1 // pred_region
      %88 = dma.done [#allocation9], 128
    $region49: #{tpu_custom_call.1} parent=1 // pred_fallthru
      _
    %v89 = vld [vmem:[#allocation2] sm:$0xff]
    %v90 = vld [vmem:[#allocation7] sm:$0xff]
    %v91 = vld [vmem:[#allocation8] sm:$0xff]
    %v92 = vld [vmem:[%s5] sm:$0xff]
    %v93 = vld [vmem:[#allocation10] sm:$0xff]
    %v94 = vld [vmem:[#allocation5] sm:$0xff]
    %v95 = vld [vmem:[#allocation5 + $0x8] sm:$0xff]
    %v96 = vld [vmem:[#allocation5 + $0x10] sm:$0xff]
    %v97 = vld [vmem:[#allocation5 + $0x18] sm:$0xff]
    %v98 = vld [vmem:[%s2] sm:$0x1]
    %v100 = vlaneseq
    %v101 = vshrl.u32 %v100, 7
    %v102 = vsub.s32 0, %v101
    %v103 = vrot.slane %v98, %v102
    %vm105 = vcmask 261120
    %v107 = vsel %vm105, %v89, 0
    %109 = vmatprep.subr.mxu0 0.0
    %110 = vmatpush1.msra.mxu0 0.0
    %111 = vmatprep.subr.mxu0 0.0
    %112 = vmatpush1.msra.mxu0 0.0
    %113 = vmatprep.subr.mxu0 0.0
    %114 = vmatpush1.msra.mxu0 0.0
    %115 = vmatprep.subr.mxu0 0.0
    %116 = vmatpush1.msra.mxu0 0.0
    %117 = vmatprep.subr.mxu0 0.0
    %118 = vmatpush1.msra.mxu0 0.0
    %119 = vmatprep.subr.mxu0 0.0
    %120 = vmatpush1.msra.mxu0 0.0
    %121 = vmatprep.subr.mxu0 0.0
    %122 = vmatpush1.msra.mxu0 0.0
    %123 = vmatprep.subr.mxu0 0.0
    %124 = vmatpush1.msra.mxu0 0.0
    %125 = vmatprep.subr.mxu0 0.0
    %126 = vmatpush1.msra.mxu0 0.0
    %127 = vmatprep.subr.mxu0 0.0
    %128 = vmatpush1.msra.mxu0 0.0
    %129 = vmatprep.subr.mxu0 0.0
    %130 = vmatpush1.msra.mxu0 0.0
    %131 = vmatprep.subr.mxu0 0.0
    %132 = vmatpush1.msra.mxu0 0.0
    %133 = vmatprep.subr.mxu0 0.0
    %134 = vmatpush1.msra.mxu0 %v97
    %135 = vmatprep.subr.mxu0 0.0
    %136 = vmatpush1.msra.mxu0 %v96
    %137 = vmatprep.subr.mxu0 0.0
    %138 = vmatpush1.msra.mxu0 %v95
    %139 = vmatprep.subr.mxu0 0.0
    %140 = vmatpush1.msra.mxu0 %v94
    %141 = vmatprep.subr.mxu0 0.0
    %142 = vmatpush2.msra.mxu0 0.0
    %143 = vmatprep.subr.mxu0 0.0
    %144 = vmatpush2.msra.mxu0 0.0
    %145 = vmatprep.subr.mxu0 0.0
    %146 = vmatpush2.msra.mxu0 0.0
    %147 = vmatprep.subr.mxu0 0.0
    %148 = vmatpush2.msra.mxu0 0.0
    %149 = vmatprep.subr.mxu0 0.0
    %150 = vmatpush2.msra.mxu0 0.0
    %151 = vmatprep.subr.mxu0 0.0
    %152 = vmatpush2.msra.mxu0 0.0
    %153 = vmatprep.subr.mxu0 0.0
    %154 = vmatpush2.msra.mxu0 0.0
    %155 = vmatprep.subr.mxu0 0.0
    %156 = vmatpush2.msra.mxu0 0.0
    %157 = vmatprep.subr.mxu0 0.0
    %158 = vmatpush2.msra.mxu0 0.0
    %159 = vmatprep.subr.mxu0 0.0
    %160 = vmatpush2.msra.mxu0 0.0
    %161 = vmatprep.subr.mxu0 0.0
    %162 = vmatpush2.msra.mxu0 0.0
    %163 = vmatprep.subr.mxu0 0.0
    %164 = vmatpush2.msra.mxu0 0.0
    %165 = vmatprep.subr.mxu0 0.0
    %166 = vmatpush2.msra.mxu0 0.0
    %167 = vmatprep.subr.mxu0 0.0
    %168 = vmatpush2.msra.mxu0 0.0
    %169 = vmatprep.subr.mxu0 0.0
    %170 = vmatpush2.msra.mxu0 0.0
    %171 = vmatprep.subr.mxu0 0.0
    %172 = vmatpush2.msra.mxu0 0.0
    %173 = vmatprep.mubr.f32.mxu0 0.0
    %174 = vmatmul.mubr.f32.gmra.mxu0 %v107
    %v175 = vpop.f32.mrf.mxu0
    %v176 = vadd.f32 %v103, %v175
    %v177 = vpop.f32.mrf.mxu0
    %178 = vdwg.mxu0
    %v179 = vlaneseq
    %v180 = vand.u32 %v179, 127
    %v181 = vcvt.s32.f32 %v180
    %vm182 = vcmp.le.f32.partialorder %v181, 4.0
    %v183 = vsel %vm182, %v176, -1e+10
    %vm184 = vcmask 39936
    %v185 = vsel %vm184, %v183, -inf
    %186 = vmax.xlane.f32.xlu0 %v185
    %v187 = vpop.xlane.xlu0 %186
    %v188 = vsub.f32 %v183, %v187
    %v189 = vmul.f32 %v188, 1.442695
    %v190 = vpow.pop %v189
    %v191 = vsel %vm184, %v190, 0.0
    %192 = vadd.xlane.f32.xlu0 %v191
    %v193 = vpop.xlane.xlu0 %192
    %v194 = vlog2.pop %v193
    %v195 = vmul.f32 %v194, 0.6931472
    %v196 = vsub.f32 %v188, %v195
    %v197 = vadd.f32 %v183, %v90
    %v198 = vsel %vm184, %v197, -inf
    %199 = vmax.xlane.f32.xlu0 %v198
    %v200 = vpop.xlane.xlu0 %199
    %vm201 = vcmp.ge.f32.partialorder %v197, %v200
    %v202 = vsel %vm201, %v181, 5.0
    %v203 = vsel %vm184, %v202, inf
    %204 = vmin.xlane.f32.xlu0 %v203
    %v205 = vpop.xlane.xlu0 %204
    %vm206 = vcmp.eq.f32.partialorder %v181, %v205
    %v207 = vsel %vm206, 1, 0
    %v208 = vcvt.s32.f32 %v207
    %v209 = vmul.f32 %v208, %v196
    %v210 = vsel %vm184, %v209, 0.0
    %211 = vadd.xlane.f32.xlu0 %v210
    %v212 = vpop.xlane.xlu0 %211
    %vm213 = vcmp.lt.f32.partialorder %v91, 0.1
    %v214 = vsel %vm213, 1, 0
    %v215 = vcvt.s32.f32 %v214
    %v216 = vmul.f32 %v215, %v92
    %v217 = vsub.f32 1.0, %v215
    %v218 = vmul.f32 %v217, %v205
    %v219 = vadd.f32 %v216, %v218
    %v220 = vmul.f32 %v219, %v93
    %v221 = vmul.f32 %v212, %v93
    %vm222 = vcmp.eq.f32.partialorder %v181, 0.0
    %v223 = vsel %vm222, 1, 0
    %v224 = vcvt.s32.f32 %v223
    %226 = vset.pattern.permute.xlu0 0
    %227 = vperm.xlu0 %226, %v220
    %v228 = vpop.permute.xlu0 %227
    %v230 = vmul.f32 %v228, %v224
    %v231 = vadd.f32 %v230, 0.0
    %v232 = vadd.f32 %v221, 0.0
    %v233 = vadd.f32 %v220, 0.0
    %v234 = vsub.f32 4.0, %v233
    %236 = vset.pattern.permute.xlu0 0
    %237 = vperm.xlu0 %236, %v234
    %v238 = vpop.permute.xlu0 %237
    %vm240 = vcmp.le.f32.partialorder %v181, %v238
    %242 = vrot.lane.b32.xlu0 %v176, 123
    %v243 = vpop.permute.xlu0 %242
    %v245 = vsel %vm240, %v243, -1e+10
    %v246 = vsel %vm184, %v245, -inf
    %247 = vmax.xlane.f32.xlu0 %v246
    %v248 = vpop.xlane.xlu0 %247
    %v249 = vsub.f32 %v245, %v248
    %v250 = vmul.f32 %v249, 1.442695
    %v251 = vpow.pop %v250
    %v252 = vsel %vm184, %v251, 0.0
    %253 = vadd.xlane.f32.xlu0 %v252
    %v254 = vpop.xlane.xlu0 %253
    %v255 = vlog2.pop %v254
    %v256 = vmul.f32 %v255, 0.6931472
    %v257 = vsub.f32 %v249, %v256
    %259 = vrot.lane.b32.xlu0 %v90, 123
    %v260 = vpop.permute.xlu0 %259
    %v262 = vadd.f32 %v245, %v260
    %v263 = vsel %vm184, %v262, -inf
    %264 = vmax.xlane.f32.xlu0 %v263
    %v265 = vpop.xlane.xlu0 %264
    %vm266 = vcmp.ge.f32.partialorder %v262, %v265
    %v267 = vsel %vm266, %v181, 5.0
    %v268 = vsel %vm184, %v267, inf
    %269 = vmin.xlane.f32.xlu0 %v268
    %v270 = vpop.xlane.xlu0 %269
    %vm271 = vcmp.eq.f32.partialorder %v181, %v270
    %v272 = vsel %vm271, 1, 0
    %v273 = vcvt.s32.f32 %v272
    %v274 = vmul.f32 %v273, %v257
    %v275 = vsel %vm184, %v274, 0.0
    %276 = vadd.xlane.f32.xlu0 %v275
    %v277 = vpop.xlane.xlu0 %276
    %v278 = vmul.f32 %v217, %v270
    %v279 = vadd.f32 %v216, %v278
    %v280 = vmul.f32 %v279, %v93
    %v281 = vmul.f32 %v277, %v93
    %vm282 = vcmp.eq.f32.partialorder %v181, 1.0
    %v283 = vsel %vm282, 1, 0
    %v284 = vcvt.s32.f32 %v283
    %286 = vset.pattern.permute.xlu0 1
    %287 = vperm.xlu0 %286, %v280
    %v288 = vpop.permute.xlu0 %287
    %v290 = vmul.f32 %v288, %v284
    %v291 = vadd.f32 %v231, %v290
    %293 = vrot.lane.b32.xlu0 %v281, 127
    %v294 = vpop.permute.xlu0 %293
    %v296 = vadd.f32 %v232, %v294
    %297 = vrot.lane.b32.xlu0 %v176, 118
    %v298 = vpop.permute.xlu0 %297
    %v300 = vsel %vm182, %v298, -1e+10
    %v301 = vsel %vm184, %v300, -inf
    %302 = vmax.xlane.f32.xlu0 %v301
    %v303 = vpop.xlane.xlu0 %302
    %v304 = vsub.f32 %v300, %v303
    %v305 = vmul.f32 %v304, 1.442695
    %v306 = vpow.pop %v305
    %v307 = vsel %vm184, %v306, 0.0
    %308 = vadd.xlane.f32.xlu0 %v307
    %v309 = vpop.xlane.xlu0 %308
    %v310 = vlog2.pop %v309
    %v311 = vmul.f32 %v310, 0.6931472
    %v312 = vsub.f32 %v304, %v311
    %313 = vrot.lane.b32.xlu0 %v90, 118
    %v314 = vpop.permute.xlu0 %313
    %v316 = vadd.f32 %v300, %v314
    %v317 = vsel %vm184, %v316, -inf
    %318 = vmax.xlane.f32.xlu0 %v317
    %v319 = vpop.xlane.xlu0 %318
    %vm320 = vcmp.ge.f32.partialorder %v316, %v319
    %v321 = vsel %vm320, %v181, 5.0
    %v322 = vsel %vm184, %v321, inf
    %323 = vmin.xlane.f32.xlu0 %v322
    %v324 = vpop.xlane.xlu0 %323
    %vm325 = vcmp.eq.f32.partialorder %v181, %v324
    %v326 = vsel %vm325, 1, 0
    %v327 = vcvt.s32.f32 %v326
    %v328 = vmul.f32 %v327, %v312
    %v329 = vsel %vm184, %v328, 0.0
    %330 = vadd.xlane.f32.xlu0 %v329
    %v331 = vpop.xlane.xlu0 %330
    %v332 = vmul.f32 %v217, %v324
    %v333 = vadd.f32 %v216, %v332
    %v334 = vmul.f32 %v333, %v93
    %v335 = vmul.f32 %v331, %v93
    %vm336 = vcmp.eq.f32.partialorder %v181, 2.0
    %v337 = vsel %vm336, 1, 0
    %v338 = vcvt.s32.f32 %v337
    %340 = vset.pattern.permute.xlu0 2
    %341 = vperm.xlu0 %340, %v334
    %v342 = vpop.permute.xlu0 %341
    %v344 = vmul.f32 %v342, %v338
    %v345 = vadd.f32 %v291, %v344
    %347 = vrot.lane.b32.xlu0 %v335, 126
    %v348 = vpop.permute.xlu0 %347
    %v350 = vadd.f32 %v296, %v348
    %v351 = vadd.f32 %v334, 0.0
    %v352 = vsub.f32 4.0, %v351
    %354 = vset.pattern.permute.xlu0 2
    %355 = vperm.xlu0 %354, %v352
    %v356 = vpop.permute.xlu0 %355
    %vm358 = vcmp.le.f32.partialorder %v181, %v356
    %359 = vrot.lane.b32.xlu0 %v176, 113
    %v360 = vpop.permute.xlu0 %359
    %v362 = vsel %vm358, %v360, -1e+10
    %v363 = vsel %vm184, %v362, -inf
    %364 = vmax.xlane.f32.xlu0 %v363
    %v365 = vpop.xlane.xlu0 %364
    %v366 = vsub.f32 %v362, %v365
    %v367 = vmul.f32 %v366, 1.442695
    %v368 = vpow.pop %v367
    %v369 = vsel %vm184, %v368, 0.0
    %370 = vadd.xlane.f32.xlu0 %v369
    %v371 = vpop.xlane.xlu0 %370
    %v372 = vlog2.pop %v371
    %v373 = vmul.f32 %v372, 0.6931472
    %v374 = vsub.f32 %v366, %v373
    %375 = vrot.lane.b32.xlu0 %v90, 113
    %v376 = vpop.permute.xlu0 %375
    %v378 = vadd.f32 %v362, %v376
    %v379 = vsel %vm184, %v378, -inf
    %380 = vmax.xlane.f32.xlu0 %v379
    %v381 = vpop.xlane.xlu0 %380
    %vm382 = vcmp.ge.f32.partialorder %v378, %v381
    %v383 = vsel %vm382, %v181, 5.0
    %v384 = vsel %vm184, %v383, inf
    %385 = vmin.xlane.f32.xlu0 %v384
    %v386 = vpop.xlane.xlu0 %385
    %vm387 = vcmp.eq.f32.partialorder %v181, %v386
    %v388 = vsel %vm387, 1, 0
    %v389 = vcvt.s32.f32 %v388
    %v390 = vmul.f32 %v389, %v374
    %v391 = vsel %vm184, %v390, 0.0
    %392 = vadd.xlane.f32.xlu0 %v391
    %v393 = vpop.xlane.xlu0 %392
    %v394 = vmul.f32 %v217, %v386
    %v395 = vadd.f32 %v216, %v394
    %v396 = vmul.f32 %v395, %v93
    %v397 = vmul.f32 %v393, %v93
    %vm398 = vcmp.eq.f32.partialorder %v181, 3.0
    %v399 = vsel %vm398, 1, 0
    %v400 = vcvt.s32.f32 %v399
    %402 = vset.pattern.permute.xlu0 3
    %403 = vperm.xlu0 %402, %v396
    %v404 = vpop.permute.xlu0 %403
    %v406 = vmul.f32 %v404, %v400
    %v407 = vadd.f32 %v345, %v406
    %409 = vrot.lane.b32.xlu0 %v397, 125
    %v410 = vpop.permute.xlu0 %409
    %v412 = vadd.f32 %v350, %v410
    %413 = vrot.lane.b32.xlu0 %v176, 108
    %v414 = vpop.permute.xlu0 %413
    %v416 = vsel %vm182, %v414, -1e+10
    %v417 = vsel %vm184, %v416, -inf
    %418 = vmax.xlane.f32.xlu0 %v417
    %v419 = vpop.xlane.xlu0 %418
    %v420 = vsub.f32 %v416, %v419
    %v421 = vmul.f32 %v420, 1.442695
    %v422 = vpow.pop %v421
    %v423 = vsel %vm184, %v422, 0.0
    %424 = vadd.xlane.f32.xlu0 %v423
    %v425 = vpop.xlane.xlu0 %424
    %v426 = vlog2.pop %v425
    %v427 = vmul.f32 %v426, 0.6931472
    %v428 = vsub.f32 %v420, %v427
    %429 = vrot.lane.b32.xlu0 %v90, 108
    %v430 = vpop.permute.xlu0 %429
    %v432 = vadd.f32 %v416, %v430
    %v433 = vsel %vm184, %v432, -inf
    %434 = vmax.xlane.f32.xlu0 %v433
    %v435 = vpop.xlane.xlu0 %434
    %vm436 = vcmp.ge.f32.partialorder %v432, %v435
    %v437 = vsel %vm436, %v181, 5.0
    %v438 = vsel %vm184, %v437, inf
    %439 = vmin.xlane.f32.xlu0 %v438
    %v440 = vpop.xlane.xlu0 %439
    %vm441 = vcmp.eq.f32.partialorder %v181, %v440
    %v442 = vsel %vm441, 1, 0
    %v443 = vcvt.s32.f32 %v442
    %v444 = vmul.f32 %v443, %v428
    %v445 = vsel %vm184, %v444, 0.0
    %446 = vadd.xlane.f32.xlu0 %v445
    %v447 = vpop.xlane.xlu0 %446
    %v448 = vmul.f32 %v217, %v440
    %v449 = vadd.f32 %v216, %v448
    %v450 = vmul.f32 %v449, %v93
    %v451 = vmul.f32 %v447, %v93
    %vm452 = vcmp.eq.f32.partialorder %v181, 4.0
    %v453 = vsel %vm452, 1, 0
    %v454 = vcvt.s32.f32 %v453
    %456 = vset.pattern.permute.xlu0 4
    %457 = vperm.xlu0 %456, %v450
    %v458 = vpop.permute.xlu0 %457
    %v460 = vmul.f32 %v458, %v454
    %v461 = vadd.f32 %v407, %v460
    %463 = vrot.lane.b32.xlu0 %v451, 124
    %v464 = vpop.permute.xlu0 %463
    %v466 = vadd.f32 %v412, %v464
    %v467 = vadd.f32 %v450, 0.0
    %v468 = vsub.f32 4.0, %v467
    %470 = vset.pattern.permute.xlu0 4
    %471 = vperm.xlu0 %470, %v468
    %v472 = vpop.permute.xlu0 %471
    %vm474 = vcmp.le.f32.partialorder %v181, %v472
    %475 = vrot.lane.b32.xlu0 %v176, 103
    %v476 = vpop.permute.xlu0 %475
    %v478 = vsel %vm474, %v476, -1e+10
    %v479 = vsel %vm184, %v478, -inf
    %480 = vmax.xlane.f32.xlu0 %v479
    %v481 = vpop.xlane.xlu0 %480
    %v482 = vsub.f32 %v478, %v481
    %v483 = vmul.f32 %v482, 1.442695
    %v484 = vpow.pop %v483
    %v485 = vsel %vm184, %v484, 0.0
    %486 = vadd.xlane.f32.xlu0 %v485
    %v487 = vpop.xlane.xlu0 %486
    %v488 = vlog2.pop %v487
    %v489 = vmul.f32 %v488, 0.6931472
    %v490 = vsub.f32 %v482, %v489
    %491 = vrot.lane.b32.xlu0 %v90, 103
    %v492 = vpop.permute.xlu0 %491
    %v494 = vadd.f32 %v478, %v492
    %v495 = vsel %vm184, %v494, -inf
    %496 = vmax.xlane.f32.xlu0 %v495
    %v497 = vpop.xlane.xlu0 %496
    %vm498 = vcmp.ge.f32.partialorder %v494, %v497
    %v499 = vsel %vm498, %v181, 5.0
    %v500 = vsel %vm184, %v499, inf
    %501 = vmin.xlane.f32.xlu0 %v500
    %v502 = vpop.xlane.xlu0 %501
    %vm503 = vcmp.eq.f32.partialorder %v181, %v502
    %v504 = vsel %vm503, 1, 0
    %v505 = vcvt.s32.f32 %v504
    %v506 = vmul.f32 %v505, %v490
    %v507 = vsel %vm184, %v506, 0.0
    %508 = vadd.xlane.f32.xlu0 %v507
    %v509 = vpop.xlane.xlu0 %508
    %v510 = vmul.f32 %v217, %v502
    %v511 = vadd.f32 %v216, %v510
    %v512 = vmul.f32 %v511, %v93
    %v513 = vmul.f32 %v509, %v93
    %vm514 = vcmp.eq.f32.partialorder %v181, 5.0
    %v515 = vsel %vm514, 1, 0
    %v516 = vcvt.s32.f32 %v515
    %518 = vset.pattern.permute.xlu0 5
    %519 = vperm.xlu0 %518, %v512
    %v520 = vpop.permute.xlu0 %519
    %v522 = vmul.f32 %v520, %v516
    %v523 = vadd.f32 %v461, %v522
    %525 = vrot.lane.b32.xlu0 %v513, 123
    %v526 = vpop.permute.xlu0 %525
    %v528 = vadd.f32 %v466, %v526
    %529 = vrot.lane.b32.xlu0 %v176, 98
    %v530 = vpop.permute.xlu0 %529
    %v532 = vsel %vm182, %v530, -1e+10
    %v533 = vsel %vm184, %v532, -inf
    %534 = vmax.xlane.f32.xlu0 %v533
    %v535 = vpop.xlane.xlu0 %534
    %v536 = vsub.f32 %v532, %v535
    %v537 = vmul.f32 %v536, 1.442695
    %v538 = vpow.pop %v537
    %v539 = vsel %vm184, %v538, 0.0
    %540 = vadd.xlane.f32.xlu0 %v539
    %v541 = vpop.xlane.xlu0 %540
    %v542 = vlog2.pop %v541
    %v543 = vmul.f32 %v542, 0.6931472
    %v544 = vsub.f32 %v536, %v543
    %545 = vrot.lane.b32.xlu0 %v90, 98
    %v546 = vpop.permute.xlu0 %545
    %v548 = vadd.f32 %v532, %v546
    %v549 = vsel %vm184, %v548, -inf
    %550 = vmax.xlane.f32.xlu0 %v549
    %v551 = vpop.xlane.xlu0 %550
    %vm552 = vcmp.ge.f32.partialorder %v548, %v551
    %v553 = vsel %vm552, %v181, 5.0
    %v554 = vsel %vm184, %v553, inf
    %555 = vmin.xlane.f32.xlu0 %v554
    %v556 = vpop.xlane.xlu0 %555
    %vm557 = vcmp.eq.f32.partialorder %v181, %v556
    %v558 = vsel %vm557, 1, 0
    %v559 = vcvt.s32.f32 %v558
    %v560 = vmul.f32 %v559, %v544
    %v561 = vsel %vm184, %v560, 0.0
    %562 = vadd.xlane.f32.xlu0 %v561
    %v563 = vpop.xlane.xlu0 %562
    %v564 = vmul.f32 %v217, %v556
    %v565 = vadd.f32 %v216, %v564
    %v566 = vmul.f32 %v565, %v93
    %v567 = vmul.f32 %v563, %v93
    %vm568 = vcmp.eq.f32.partialorder %v181, 6.0
    %v569 = vsel %vm568, 1, 0
    %v570 = vcvt.s32.f32 %v569
    %572 = vset.pattern.permute.xlu0 6
    %573 = vperm.xlu0 %572, %v566
    %v574 = vpop.permute.xlu0 %573
    %v576 = vmul.f32 %v574, %v570
    %v577 = vadd.f32 %v523, %v576
    %579 = vrot.lane.b32.xlu0 %v567, 122
    %v580 = vpop.permute.xlu0 %579
    %v582 = vadd.f32 %v528, %v580
    %v583 = vadd.f32 %v566, 0.0
    %v584 = vsub.f32 4.0, %v583
    %586 = vset.pattern.permute.xlu0 6
    %587 = vperm.xlu0 %586, %v584
    %v588 = vpop.permute.xlu0 %587
    %vm590 = vcmp.le.f32.partialorder %v181, %v588
    %591 = vrot.lane.b32.xlu0 %v176, 93
    %v592 = vpop.permute.xlu0 %591
    %v594 = vsel %vm590, %v592, -1e+10
    %v595 = vsel %vm184, %v594, -inf
    %596 = vmax.xlane.f32.xlu0 %v595
    %v597 = vpop.xlane.xlu0 %596
    %v598 = vsub.f32 %v594, %v597
    %v599 = vmul.f32 %v598, 1.442695
    %v600 = vpow.pop %v599
    %v601 = vsel %vm184, %v600, 0.0
    %602 = vadd.xlane.f32.xlu0 %v601
    %v603 = vpop.xlane.xlu0 %602
    %v604 = vlog2.pop %v603
    %v605 = vmul.f32 %v604, 0.6931472
    %v606 = vsub.f32 %v598, %v605
    %607 = vrot.lane.b32.xlu0 %v90, 93
    %v608 = vpop.permute.xlu0 %607
    %v610 = vadd.f32 %v594, %v608
    %v611 = vsel %vm184, %v610, -inf
    %612 = vmax.xlane.f32.xlu0 %v611
    %v613 = vpop.xlane.xlu0 %612
    %vm614 = vcmp.ge.f32.partialorder %v610, %v613
    %v615 = vsel %vm614, %v181, 5.0
    %v616 = vsel %vm184, %v615, inf
    %617 = vmin.xlane.f32.xlu0 %v616
    %v618 = vpop.xlane.xlu0 %617
    %vm619 = vcmp.eq.f32.partialorder %v181, %v618
    %v620 = vsel %vm619, 1, 0
    %v621 = vcvt.s32.f32 %v620
    %v622 = vmul.f32 %v621, %v606
    %v623 = vsel %vm184, %v622, 0.0
    %624 = vadd.xlane.f32.xlu0 %v623
    %v625 = vpop.xlane.xlu0 %624
    %v626 = vmul.f32 %v217, %v618
    %v627 = vadd.f32 %v216, %v626
    %v628 = vmul.f32 %v627, %v93
    %v629 = vmul.f32 %v625, %v93
    %vm630 = vcmp.eq.f32.partialorder %v181, 7.0
    %v631 = vsel %vm630, 1, 0
    %v632 = vcvt.s32.f32 %v631
    %634 = vset.pattern.permute.xlu0 7
    %635 = vperm.xlu0 %634, %v628
    %v636 = vpop.permute.xlu0 %635
    %v638 = vmul.f32 %v636, %v632
    %v639 = vadd.f32 %v577, %v638
    %641 = vrot.lane.b32.xlu0 %v629, 121
    %v642 = vpop.permute.xlu0 %641
    %v644 = vadd.f32 %v582, %v642
    %vm645 = vcmask 64512
    %646 = vst.msk [vmem:[#allocation11] sm:$0xff] %vm645, %v639
    %vm647 = vcmask 7168
    %648 = vst.msk [vmem:[%s8] sm:$0xff] %vm647, %v644
    // Predicated region
    $region50: #{tpu_custom_call.1} parent=1 // pred_check
      _
    $region51: #{tpu_custom_call.1} parent=1 // pred_check_branch
      %650 = sbr.rel (0) target = $region53
    $region52: #{tpu_custom_call.1} parent=1 // pred_region
      %s652 = ssub.s32 128, 128
      %653 = vsyncadd [#allocation4], %s652
      %s655 = sshll.u32 [#allocation11], 4
      %s656 = int_to_ptr.vmem [resolvable:$true] %s655
      %658 = dma.vmem_to_hbm [thread:$0]  %s656, 128, %s7, [#allocation4]
    $region53: #{tpu_custom_call.1} parent=1 // pred_fallthru
      _
    // Predicated region
    $region54: #{tpu_custom_call.1} parent=1 // pred_check
      _
    $region55: #{tpu_custom_call.1} parent=1 // pred_check_branch
      %660 = sbr.rel (0) target = $region57
    $region56: #{tpu_custom_call.1} parent=1 // pred_region
      _
    $region57: #{tpu_custom_call.1} parent=1 // pred_fallthru
      _
    // Predicated region
    $region58: #{tpu_custom_call.1} parent=1 // pred_check
      _
    $region59: #{tpu_custom_call.1} parent=1 // pred_check_branch
      %662 = sbr.rel (0) target = $region61
    $region60: #{tpu_custom_call.1} parent=1 // pred_region
      %663 = dma.done [#allocation4], 128
    $region61: #{tpu_custom_call.1} parent=1 // pred_fallthru
      _
    // Predicated region
    $region62: #{tpu_custom_call.1} parent=1 // pred_check
      _
    $region63: #{tpu_custom_call.1} parent=1 // pred_check_branch
      %665 = sbr.rel (0) target = $region65
    $region64: #{tpu_custom_call.1} parent=1 // pred_region
      _
    $region65: #{tpu_custom_call.1} parent=1 // pred_fallthru
      _
    %666 = vsyncpa [#allocation3], 1
    %667 = vsyncpa [#allocation6], 1
    %668 = vsyncpa [#allocation9], 1
    %669 = vsyncpa [#allocation4], 1

</llo_original>
